<compile_context>
chip_gen: v6e
topology: v6e:2x2x1
jax: 0.10.0
libtpu: 0.0.40
codegen_flags: <defaults>
</compile_context>

<pallas_src>
import jax
import jax.numpy as jnp
from jax.experimental import pallas as pl
from jax.experimental.pallas import tpu as pltpu

BN_EPS = 1e-5


def _num_hidden_splits(hidden):
    """Hidden-axis split count for one MLP head.

    2 on v7x megacore for the big (H>=2048) heads so each TensorCore streams one
    contiguous half of the weights; 1 everywhere else (v5e/v6e have a single
    TensorCore, where a split is just a serial loop plus an extra partial sum).
    """
    try:
        kind = jax.devices()[0].device_kind.lower()
    except Exception:  # pragma: no cover - defensive, falls back to the safe choice
        kind = ""
    megacore = ("v7" in kind) or ("tpu7" in kind)
    if megacore and hidden >= 2048 and hidden % 256 == 0:
        return 2
    return 1


def _mlp_head_kernel(x_ref, w1_ref, gb_ref, w2_ref, b2_ref, out_ref):
    """One full MLP head partial per grid step (grid = (num_splits,), 'parallel').

    out[c] = relu(batchnorm_train(x @ W1[c])) @ W2[c]  (+ b2 on split 0 only)

    BatchNorm1d (training mode) is per-feature, so statistics computed on a
    hidden-axis split are exact (the full batch axis is resident).  The first
    Linear's bias is omitted: BN's batch-mean subtraction cancels it exactly.
    """
    # Linear 1: bf16 x bf16 -> f32 accumulation on the MXU.
    h = jnp.dot(x_ref[...], w1_ref[0], preferred_element_type=jnp.float32)

    # BatchNorm1d (training mode), folded into a single per-feature scale/shift.
    mean = jnp.mean(h, axis=0, keepdims=True)
    var = jnp.mean((h - mean) ** 2, axis=0, keepdims=True)
    scale = gb_ref[0, 0:1, :] * jax.lax.rsqrt(var + BN_EPS)      # gamma * rsqrt(var+eps)
    shift = gb_ref[0, 1:2, :] - mean * scale                     # beta - mean*scale
    hn = jnp.maximum(h * scale + shift, 0.0)                     # ReLU

    # Linear 2 (per-split partial), second bias added only once (split 0).
    acc = jnp.dot(hn.astype(w2_ref.dtype), w2_ref[0],
                  preferred_element_type=jnp.float32)
    bias = jnp.where(pl.program_id(0) == 0, b2_ref[...], jnp.zeros_like(b2_ref[...]))
    out_ref[0] = acc + bias


def mlp_pallas(x, params):
    """One MLP head (Linear -> BN1d(train) -> ReLU -> Linear) via pallas_call.

    `params` carries pre-tiled weights: (w1t (S,D,hs) bf16, b1 (unused),
    gbt (S,2,hs) f32, w2t (S,hs,P) bf16, b2 (1,P) f32).
    """
    w1t, b1, gbt, w2t, b2 = params
    del b1  # cancelled exactly by training-mode BN mean subtraction; never streamed
    S, D, hs = w1t.shape
    P = w2t.shape[-1]
    B = x.shape[0]
    xb = x.astype(jnp.bfloat16)

    # Per-step working set (all blocks), double buffered, plus headroom; capped so
    # it stays safe on v7x's 64 MiB-per-TC VMEM (v5e/v6e have 128 MiB physical).
    block_bytes = (B * D * 2) + (D * hs * 2) + (2 * hs * 4) + (hs * P * 2) + (P * 4) + (B * P * 4)
    vmem_limit = int(min(60 << 20, max(32 << 20, 2 * block_bytes + (8 << 20))))

    partials = pl.pallas_call(
        _mlp_head_kernel,
        out_shape=jax.ShapeDtypeStruct((S, B, P), jnp.float32),
        grid_spec=pltpu.PrefetchScalarGridSpec(
            num_scalar_prefetch=0,
            grid=(S,),
            in_specs=[
                pl.BlockSpec((B, D), lambda c: (0, 0)),        # x: resident, fetched once
                pl.BlockSpec((1, D, hs), lambda c: (c, 0, 0)),  # W1 split: contiguous bf16 block
                pl.BlockSpec((1, 2, hs), lambda c: (c, 0, 0)),  # gamma/beta split
                pl.BlockSpec((1, hs, P), lambda c: (c, 0, 0)),  # W2 split: contiguous bf16 block
                pl.BlockSpec((1, P), lambda c: (0, 0)),         # b2: fetched once
            ],
            out_specs=pl.BlockSpec((1, B, P), lambda c: (c, 0, 0)),
        ),
        compiler_params=pltpu.CompilerParams(
            dimension_semantics=("parallel",),   # megacore split on v7x; no-op elsewhere
            vmem_limit_bytes=vmem_limit),
    )(xb, w1t, gbt, w2t, b2)

    # b2 was already added on split 0 inside the kernel; only sum partials if split.
    return partials[0] if S == 1 else partials.sum(axis=0)


def mlp_ref(x, params):
    """Pure-JAX reference for one MLP head at the kernel's precision
    (bf16 weight streams, f32 accumulation, PyTorch training-mode BN1d, b1 kept
    to document that it cancels under BN)."""
    w1t, b1, gbt, w2t, b2 = params
    S, D, hs = w1t.shape
    H = S * hs
    P = w2t.shape[-1]
    w1 = jnp.transpose(w1t, (1, 0, 2)).reshape(D, H)
    gamma = gbt[:, 0, :].reshape(H)
    beta = gbt[:, 1, :].reshape(H)
    w2 = w2t.reshape(H, P)
    h = jnp.dot(x.astype(jnp.bfloat16), w1, preferred_element_type=jnp.float32) + b1
    mean = h.mean(axis=0, keepdims=True)
    var = ((h - mean) ** 2).mean(axis=0, keepdims=True)
    hn = (h - mean) * jax.lax.rsqrt(var + BN_EPS) * gamma + beta
    hn = jnp.maximum(hn, 0.0)
    return jnp.dot(hn.astype(jnp.bfloat16), w2, preferred_element_type=jnp.float32) + b2


def init_mlp_params(key, dim, hidden, out, num_splits=1):
    """Deterministic MLP parameters, pre-tiled along the hidden axis so every
    per-split weight block is one fully contiguous HBM->VMEM DMA."""
    assert hidden % num_splits == 0
    hs = hidden // num_splits
    assert hs % 128 == 0, "per-split hidden size must be lane-aligned (multiple of 128)"
    k1, k2, k3, k4, k5, k6 = jax.random.split(key, 6)
    w1 = (jax.random.normal(k1, (dim, hidden), jnp.float32) / jnp.sqrt(dim)).astype(jnp.bfloat16)
    b1 = jax.random.normal(k2, (hidden,), jnp.float32) * 0.01
    gamma = 1.0 + 0.1 * jax.random.normal(k5, (hidden,), jnp.float32)
    beta = 0.1 * jax.random.normal(k6, (hidden,), jnp.float32)
    w2 = (jax.random.normal(k3, (hidden, out), jnp.float32) / jnp.sqrt(hidden)).astype(jnp.bfloat16)
    b2 = (jax.random.normal(k4, (out,), jnp.float32) * 0.01).reshape(1, out)

    w1t = w1.reshape(dim, num_splits, hs).transpose(1, 0, 2)                       # (S, D, hs)
    gbt = jnp.stack([gamma, beta]).reshape(2, num_splits, hs).transpose(1, 0, 2)   # (S, 2, hs)
    w2t = w2.reshape(num_splits, hs, out)                                          # (S, hs, P)
    return (w1t, b1, gbt, w2t, b2)


def netwrapper_forward(x, backbone_params, projector_params, mlp1_params, mlp2_params):
    """Forward of NetWrapper: returns (projection, projector_1, projector_2, reprs)."""
    A1, A2, A3 = backbone_params

    # ----- synthetic backbone `net` with three hooked layers (plain-JAX glue) -----
    # TODO(synk): the real backbone `net` is an external constructor argument; a tiny
    # deterministic stand-in produces the three hooked, flattened representations.
    B = x.shape[0]
    h0 = x.reshape(B, -1).astype(jnp.bfloat16)                                      # flatten NCHW
    repr_m3 = jax.nn.relu(jnp.dot(h0, A1, preferred_element_type=jnp.float32))      # dim 2048
    repr_m2 = jax.nn.relu(jnp.dot(repr_m3.astype(jnp.bfloat16), A2,
                                  preferred_element_type=jnp.float32))              # dim 1024
    repr_m1 = jax.nn.relu(jnp.dot(repr_m2.astype(jnp.bfloat16), A3,
                                  preferred_element_type=jnp.float32))              # main repr

    # ----- MLP heads (Pallas hot path) -----
    # Note: if callers run two augmented views through the same heads, concatenate
    # them into one call so the weight stream is amortized over more rows.
    projection = mlp_pallas(repr_m1, projector_params)
    projector_1 = mlp_pallas(repr_m2, mlp1_params)
    projector_2 = mlp_pallas(repr_m3, mlp2_params)
    return projection, projector_1, projector_2, (repr_m1, repr_m2, repr_m3)


if __name__ == "__main__":
    key = jax.random.PRNGKey(0)
    kx, kb1, kb2, kb3, kp, km1, km2 = jax.random.split(key, 7)

    # Small, module-consistent shapes.
    BATCH = 2
    D_FLAT = 4 * 16 * 16          # flattened NCHW input -> 1024
    D_MAIN = 512                  # main representation dim (backbone dependent)
    PROJ_SIZE = 256               # projection_size (constructor arg)
    PROJ_HIDDEN = 512             # projection_hidden_size (constructor arg)
    HIDDEN_MLP = 4096             # MLP default hidden_size (hard-coded in module)

    x = jax.random.normal(kx, (BATCH, 4, 16, 16), jnp.float32)   # NCHW

    # Synthetic backbone weights (stand-in for the external `net`), bf16 streamed.
    A1 = (jax.random.normal(kb1, (D_FLAT, 2048), jnp.float32) / jnp.sqrt(D_FLAT)).astype(jnp.bfloat16)
    A2 = (jax.random.normal(kb2, (2048, 1024), jnp.float32) / jnp.sqrt(2048)).astype(jnp.bfloat16)
    A3 = (jax.random.normal(kb3, (1024, D_MAIN), jnp.float32) / jnp.sqrt(1024)).astype(jnp.bfloat16)
    backbone = (A1, A2, A3)

    # Head parameters (shapes exactly as the module's __init__ implies).
    # The tiny projector head always uses a single split / single grid step.
    big_splits = _num_hidden_splits(HIDDEN_MLP)
    projector_params = init_mlp_params(kp, D_MAIN, PROJ_HIDDEN, PROJ_SIZE, num_splits=1)
    mlp1_params = init_mlp_params(km1, 1024, HIDDEN_MLP, PROJ_SIZE, num_splits=big_splits)
    mlp2_params = init_mlp_params(km2, 2048, HIDDEN_MLP, PROJ_SIZE, num_splits=big_splits)

    projection, projector_1, projector_2, reprs = netwrapper_forward(
        x, backbone, projector_params, mlp1_params, mlp2_params)
    jax.block_until_ready((projection, projector_1, projector_2))

    # Sanity checks against a pure-JAX reference of the MLP heads.
    repr_m1, repr_m2, repr_m3 = reprs
    ref_proj = mlp_ref(repr_m1, projector_params)
    ref_p1 = mlp_ref(repr_m2, mlp1_params)
    ref_p2 = mlp_ref(repr_m3, mlp2_params)

    assert projection.shape == (BATCH, PROJ_SIZE)
    assert projector_1.shape == (BATCH, PROJ_SIZE)
    assert projector_2.shape == (BATCH, PROJ_SIZE)
    for got, ref in ((projection, ref_proj), (projector_1, ref_p1), (projector_2, ref_p2)):
        assert bool(jnp.all(jnp.isfinite(got)))
        assert bool(jnp.allclose(got, ref, rtol=2e-2, atol=2e-2))

    print("KERNEL_OK")
</pallas_src>

<mosaic_0001>
module attributes {stable_mosaic.version = 11 : i64} {
  func.func @_mlp_head_kernel(%arg0: i32, %arg1: memref<2x512xbf16, #tpu.memory_space<vmem>>, %arg2: memref<1x512x512xbf16, #tpu.memory_space<vmem>>, %arg3: memref<1x2x512xf32, #tpu.memory_space<vmem>>, %arg4: memref<1x512x256xbf16, #tpu.memory_space<vmem>>, %arg5: memref<1x256xf32, #tpu.memory_space<vmem>>, %arg6: memref<1x2x256xf32, #tpu.memory_space<vmem>>) attributes {dimension_semantics = [#tpu.dimension_semantics<parallel>], iteration_bounds = array<i64: 1>, scalar_prefetch = 0 : i64, scratch_operands = 0 : i64, tpu.core_type = #tpu.core_type<tc>, window_params = [{pipeline_mode = #tpu.pipeline_mode<synchronous>, transform_indices = @transform_0, window_bounds = array<i64: 2, 512>}, {transform_indices = @transform_1, window_bounds = array<i64: 1, 512, 512>}, {transform_indices = @transform_2, window_bounds = array<i64: 1, 2, 512>}, {transform_indices = @transform_3, window_bounds = array<i64: 1, 512, 256>}, {pipeline_mode = #tpu.pipeline_mode<synchronous>, transform_indices = @transform_4, window_bounds = array<i64: 1, 256>}, {transform_indices = @transform_5, window_bounds = array<i64: 1, 2, 256>}]} {
    %c0 = arith.constant 0 : index
    %c0_0 = arith.constant 0 : index
    %0 = vector.load %arg1[%c0, %c0_0] : memref<2x512xbf16, #tpu.memory_space<vmem>>, vector<2x512xbf16>
    %c0_1 = arith.constant 0 : index
    %c0_2 = arith.constant 0 : index
    %c0_3 = arith.constant 0 : index
    %1 = vector.load %arg2[%c0_1, %c0_2, %c0_3] : memref<1x512x512xbf16, #tpu.memory_space<vmem>>, vector<1x512x512xbf16>
    %2 = vector.shape_cast %1 : vector<1x512x512xbf16> to vector<512x512xbf16>
    %cst = arith.constant dense<0.000000e+00> : vector<2x512xf32>
    %3 = tpu.matmul %0, %2, %cst {dimension_numbers = #tpu.dot_dimension_numbers<[1], [0], [0], [1], [0, 0, 1, 1], [], []>} : vector<2x512xbf16>, vector<512x512xbf16>, vector<2x512xf32> -> vector<2x512xf32>
    %cst_4 = arith.constant dense<0.000000e+00> : vector<512xf32>
    %4 = vector.multi_reduction <add>, %3, %cst_4 [0] : vector<2x512xf32> to vector<512xf32>
    %5 = vector.shape_cast %4 : vector<512xf32> to vector<1x512xf32>
    %cst_5 = arith.constant 2.000000e+00 : f32
    %6 = vector.broadcast %cst_5 : f32 to vector<1x512xf32>
    %7 = arith.divf %5, %6 : vector<1x512xf32>
    %8 = vector.broadcast %7 : vector<1x512xf32> to vector<2x512xf32>
    %9 = arith.subf %3, %8 : vector<2x512xf32>
    %10 = arith.mulf %9, %9 : vector<2x512xf32>
    %cst_6 = arith.constant dense<0.000000e+00> : vector<512xf32>
    %11 = vector.multi_reduction <add>, %10, %cst_6 [0] : vector<2x512xf32> to vector<512xf32>
    %12 = vector.shape_cast %11 : vector<512xf32> to vector<1x512xf32>
    %cst_7 = arith.constant 2.000000e+00 : f32
    %13 = vector.broadcast %cst_7 : f32 to vector<1x512xf32>
    %14 = arith.divf %12, %13 : vector<1x512xf32>
    %c0_8 = arith.constant 0 : index
    %c0_9 = arith.constant 0 : index
    %c0_10 = arith.constant 0 : index
    %15 = vector.load %arg3[%c0_8, %c0_9, %c0_10] : memref<1x2x512xf32, #tpu.memory_space<vmem>>, vector<1x1x512xf32>
    %16 = vector.shape_cast %15 : vector<1x1x512xf32> to vector<1x512xf32>
    %cst_11 = arith.constant 9.99999974E-6 : f32
    %17 = vector.broadcast %cst_11 : f32 to vector<1x512xf32>
    %18 = arith.addf %14, %17 : vector<1x512xf32>
    %19 = math.rsqrt %18 : vector<1x512xf32>
    %20 = arith.mulf %16, %19 : vector<1x512xf32>
    %c0_12 = arith.constant 0 : index
    %c1 = arith.constant 1 : index
    %c0_13 = arith.constant 0 : index
    %21 = vector.load %arg3[%c0_12, %c1, %c0_13] : memref<1x2x512xf32, #tpu.memory_space<vmem>>, vector<1x1x512xf32>
    %22 = vector.shape_cast %21 : vector<1x1x512xf32> to vector<1x512xf32>
    %23 = arith.mulf %7, %20 : vector<1x512xf32>
    %24 = arith.subf %22, %23 : vector<1x512xf32>
    %25 = vector.broadcast %20 : vector<1x512xf32> to vector<2x512xf32>
    %26 = arith.mulf %3, %25 : vector<2x512xf32>
    %27 = vector.broadcast %24 : vector<1x512xf32> to vector<2x512xf32>
    %28 = arith.addf %26, %27 : vector<2x512xf32>
    %cst_14 = arith.constant 0.000000e+00 : f32
    %29 = vector.broadcast %cst_14 : f32 to vector<2x512xf32>
    %30 = arith.maximumf %28, %29 : vector<2x512xf32>
    %31 = arith.truncf %30 : vector<2x512xf32> to vector<2x512xbf16>
    %c0_15 = arith.constant 0 : index
    %c0_16 = arith.constant 0 : index
    %c0_17 = arith.constant 0 : index
    %32 = vector.load %arg4[%c0_15, %c0_16, %c0_17] : memref<1x512x256xbf16, #tpu.memory_space<vmem>>, vector<1x512x256xbf16>
    %33 = vector.shape_cast %32 : vector<1x512x256xbf16> to vector<512x256xbf16>
    %cst_18 = arith.constant dense<0.000000e+00> : vector<2x256xf32>
    %34 = tpu.matmul %31, %33, %cst_18 {dimension_numbers = #tpu.dot_dimension_numbers<[1], [0], [0], [1], [0, 0, 1, 1], [], []>} : vector<2x512xbf16>, vector<512x256xbf16>, vector<2x256xf32> -> vector<2x256xf32>
    %c0_i32 = arith.constant 0 : i32
    %35 = arith.cmpi eq, %arg0, %c0_i32 : i32
    %c0_19 = arith.constant 0 : index
    %c0_20 = arith.constant 0 : index
    %36 = vector.load %arg5[%c0_19, %c0_20] : memref<1x256xf32, #tpu.memory_space<vmem>>, vector<1x256xf32>
    %cst_21 = arith.constant 0.000000e+00 : f32
    %37 = vector.broadcast %cst_21 : f32 to vector<1x256xf32>
    %38 = arith.select %35, %36, %37 : vector<1x256xf32>
    %39 = vector.broadcast %38 : vector<1x256xf32> to vector<2x256xf32>
    %40 = arith.addf %34, %39 : vector<2x256xf32>
    %c0_22 = arith.constant 0 : index
    %c0_23 = arith.constant 0 : index
    %c0_24 = arith.constant 0 : index
    %41 = vector.load %arg6[%c0_22, %c0_23, %c0_24] : memref<1x2x256xf32, #tpu.memory_space<vmem>>, vector<1x2x256xf32>
    %42 = vector.shape_cast %41 : vector<1x2x256xf32> to vector<2x256xf32>
    %43 = vector.shape_cast %40 : vector<2x256xf32> to vector<1x2x256xf32>
    tpu.vector_store %arg6[%c0_22, %c0_23, %c0_24], %43 {strides = array<i32>} : memref<1x2x256xf32, #tpu.memory_space<vmem>>, vector<1x2x256xf32>,
    return
  }
  func.func @transform_0(%arg0: i32) -> (i32, i32) {
    %c0_i32 = arith.constant 0 : i32
    %c0_i32_0 = arith.constant 0 : i32
    %c0_i32_1 = arith.constant 0 : i32
    return %c0_i32, %c0_i32_0 : i32, i32
  }
  func.func @transform_1(%arg0: i32) -> (i32, i32, i32) {
    %c0_i32 = arith.constant 0 : i32
    %c0_i32_0 = arith.constant 0 : i32
    %c0_i32_1 = arith.constant 0 : i32
    return %arg0, %c0_i32, %c0_i32_0 : i32, i32, i32
  }
  func.func @transform_2(%arg0: i32) -> (i32, i32, i32) {
    %c0_i32 = arith.constant 0 : i32
    %c0_i32_0 = arith.constant 0 : i32
    %c0_i32_1 = arith.constant 0 : i32
    return %arg0, %c0_i32, %c0_i32_0 : i32, i32, i32
  }
  func.func @transform_3(%arg0: i32) -> (i32, i32, i32) {
    %c0_i32 = arith.constant 0 : i32
    %c0_i32_0 = arith.constant 0 : i32
    %c0_i32_1 = arith.constant 0 : i32
    return %arg0, %c0_i32, %c0_i32_0 : i32, i32, i32
  }
  func.func @transform_4(%arg0: i32) -> (i32, i32) {
    %c0_i32 = arith.constant 0 : i32
    %c0_i32_0 = arith.constant 0 : i32
    %c0_i32_1 = arith.constant 0 : i32
    return %c0_i32, %c0_i32_0 : i32, i32
  }
  func.func @transform_5(%arg0: i32) -> (i32, i32, i32) {
    %c0_i32 = arith.constant 0 : i32
    %c0_i32_0 = arith.constant 0 : i32
    %c0_i32_1 = arith.constant 0 : i32
    return %arg0, %c0_i32, %c0_i32_0 : i32, i32, i32
  }
}

</mosaic_0001>

<llo_original>
// kernel: tpu_custom_call.1
$region0: #{tpu_custom_call.1}
  #allocation0 [shape = 'u32[]', space=smem, size = 0x4, offset = 0x4, fixed_abs, tag = 'smem constant byte address 0x4 - core index']
  #allocation1 [shape = 'u32[144,128]{1,0:T(1,128)}', space=vmem, size = 0x12000, scoped, tag = 'internal scratch']
  %s0 = inlined_call_operand.hbm [shape: bf16[2,512], index: 0, kind: input, shape index: {}]
  %s1 = inlined_call_operand.hbm [shape: bf16[1,512,512], index: 1, kind: input, shape index: {}]
  %s2 = inlined_call_operand.hbm [shape: f32[1,2,512], index: 2, kind: input, shape index: {}]
  %s3 = inlined_call_operand.hbm [shape: bf16[1,512,256], index: 3, kind: input, shape index: {}]
  %s4 = inlined_call_operand.vmem [shape: f32[1,256], index: 4, kind: input, shape index: {}]
  %s5 = inlined_call_operand.hbm [shape: f32[1,2,256], index: 5, kind: output, shape index: {}]
  %s6 = sld [smem:[#allocation0]]
  $region46: #{tpu_custom_call.1} parent=0
    _
  %s8 = ssub.s32 1, %s6
  %s9 = scalar_select 0, %s8, %s6
  $region1: #{tpu_custom_call.1} parent=0
    #allocation2 [shape = 'u8[2048]{0}', space=vmem, size = 0x800, scoped, tag = 'input window, operand 0, single buffered']
    #allocation3 [shape = 's32[1]{0}', space=sflag, size = 0x4, scoped, tag = 'scoped memory for tpu_custom_call.1']
    #allocation4 [shape = 's32[1]{0}', space=sflag, size = 0x4, scoped, tag = 'scoped memory for tpu_custom_call.1']
    #allocation5 [shape = 'u8[524288]{0}', space=vmem, size = 0x80000, scoped, tag = 'input window, operand 1, single buffered']
    #allocation6 [shape = 's32[1]{0}', space=sflag, size = 0x4, scoped, tag = 'scoped memory for tpu_custom_call.1']
    #allocation7 [shape = 'u8[4096]{0}', space=vmem, size = 0x1000, scoped, tag = 'input window, operand 2, single buffered']
    #allocation8 [shape = 'u8[262144]{0}', space=vmem, size = 0x40000, scoped, tag = 'input window, operand 3, single buffered']
    #allocation9 [shape = 's32[1]{0}', space=sflag, size = 0x4, scoped, tag = 'scoped memory for tpu_custom_call.1']
    #allocation10 [shape = 'u8[2048]{0}', space=vmem, size = 0x800, scoped, tag = 'output window, operand 0, single buffered']
    %10 = vsyncpa [#allocation3], 0
    %11 = vsyncpa [#allocation6], 0
    %12 = vsyncpa [#allocation9], 0
    %13 = vsyncpa [#allocation4], 0
    // Predicated region
    $region2: #{tpu_custom_call.1} parent=1 // pred_check
      _
    $region3: #{tpu_custom_call.1} parent=1 // pred_check_branch
      %15 = sbr.rel (0) target = $region5
    $region4: #{tpu_custom_call.1} parent=1 // pred_region
      %s17 = ssub.s32 64, 64
      %18 = vsyncadd [#allocation3], %s17
      %s20 = sshll.u32 [#allocation2], 4
      %s21 = int_to_ptr.vmem [resolvable:$true] %s20
      %23 = dma.hbm_to_vmem [thread:$0]  %s0, 64, %s21, [#allocation3]
    $region5: #{tpu_custom_call.1} parent=1 // pred_fallthru
      _
    // Predicated region
    $region6: #{tpu_custom_call.1} parent=1 // pred_check
      _
    $region7: #{tpu_custom_call.1} parent=1 // pred_check_branch
      %25 = sbr.rel (0) target = $region9
    $region8: #{tpu_custom_call.1} parent=1 // pred_region
      %s27 = ssub.s32 16384, 16384
      %28 = vsyncadd [#allocation6], %s27
      %s29 = sshll.u32 [#allocation5], 4
      %s30 = int_to_ptr.vmem [resolvable:$true] %s29
      %35 = dma.hbm_to_vmem [thread:$0]  %s1, 16384, %s30, [#allocation6], 256, 256, 16
    $region9: #{tpu_custom_call.1} parent=1 // pred_fallthru
      _
    // Predicated region
    $region10: #{tpu_custom_call.1} parent=1 // pred_check
      _
    $region11: #{tpu_custom_call.1} parent=1 // pred_check_branch
      %37 = sbr.rel (0) target = $region13
    $region12: #{tpu_custom_call.1} parent=1 // pred_region
      %s39 = ssub.s32 128, 128
      %40 = vsyncadd [#allocation6], %s39
      %s42 = sshll.u32 [#allocation7], 4
      %s43 = int_to_ptr.vmem [resolvable:$true] %s42
      %45 = dma.hbm_to_vmem [thread:$0]  %s2, 128, %s43, [#allocation6]
    $region13: #{tpu_custom_call.1} parent=1 // pred_fallthru
      _
    // Predicated region
    $region14: #{tpu_custom_call.1} parent=1 // pred_check
      _
    $region15: #{tpu_custom_call.1} parent=1 // pred_check_branch
      %47 = sbr.rel (0) target = $region17
    $region16: #{tpu_custom_call.1} parent=1 // pred_region
      %s49 = ssub.s32 8192, 8192
      %50 = vsyncadd [#allocation9], %s49
      %s51 = sshll.u32 [#allocation8], 4
      %s52 = int_to_ptr.vmem [resolvable:$true] %s51
      %57 = dma.hbm_to_vmem [thread:$0]  %s3, 8192, %s52, [#allocation9], 128, 128, 8
    $region17: #{tpu_custom_call.1} parent=1 // pred_fallthru
      _
    // Predicated region
    $region18: #{tpu_custom_call.1} parent=1 // pred_check
      _
    $region19: #{tpu_custom_call.1} parent=1 // pred_check_branch
      %59 = sbr.rel (0) target = $region21
    $region20: #{tpu_custom_call.1} parent=1 // pred_region
      _
    $region21: #{tpu_custom_call.1} parent=1 // pred_fallthru
      _
    // Predicated region
    $region22: #{tpu_custom_call.1} parent=1 // pred_check
      _
    $region23: #{tpu_custom_call.1} parent=1 // pred_check_branch
      %61 = sbr.rel (0) target = $region25
    $region24: #{tpu_custom_call.1} parent=1 // pred_region
      %62 = dma.done [#allocation3], 64
    $region25: #{tpu_custom_call.1} parent=1 // pred_fallthru
      _
    // Predicated region
    $region26: #{tpu_custom_call.1} parent=1 // pred_check
      _
    $region27: #{tpu_custom_call.1} parent=1 // pred_check_branch
      %64 = sbr.rel (0) target = $region29
    $region28: #{tpu_custom_call.1} parent=1 // pred_region
      %65 = dma.done [#allocation6], 16384
    $region29: #{tpu_custom_call.1} parent=1 // pred_fallthru
      _
    // Predicated region
    $region30: #{tpu_custom_call.1} parent=1 // pred_check
      _
    $region31: #{tpu_custom_call.1} parent=1 // pred_check_branch
      %67 = sbr.rel (0) target = $region33
    $region32: #{tpu_custom_call.1} parent=1 // pred_region
      %68 = dma.done [#allocation6], 128
    $region33: #{tpu_custom_call.1} parent=1 // pred_fallthru
      _
    // Predicated region
    $region34: #{tpu_custom_call.1} parent=1 // pred_check
      _
    $region35: #{tpu_custom_call.1} parent=1 // pred_check_branch
      %70 = sbr.rel (0) target = $region37
    $region36: #{tpu_custom_call.1} parent=1 // pred_region
      %71 = dma.done [#allocation9], 8192
    $region37: #{tpu_custom_call.1} parent=1 // pred_fallthru
      _
    %v72 = vld [vmem:[#allocation2] sm:$0xf]
    %v73 = vld [vmem:[#allocation5] sm:$0xff]
    %v74 = vld [vmem:[#allocation5 + $0x8] sm:$0xff]
    %v75 = vld [vmem:[#allocation5 + $0x10] sm:$0xff]
    %v76 = vld [vmem:[#allocation5 + $0x18] sm:$0xff]
    %v77 = vld [vmem:[#allocation5 + $0x20] sm:$0xff]
    %v78 = vld [vmem:[#allocation5 + $0x28] sm:$0xff]
    %v79 = vld [vmem:[#allocation5 + $0x30] sm:$0xff]
    %v80 = vld [vmem:[#allocation5 + $0x38] sm:$0xff]
    %v81 = vld [vmem:[#allocation5 + $0x40] sm:$0xff]
    %v82 = vld [vmem:[#allocation5 + $0x48] sm:$0xff]
    %v83 = vld [vmem:[#allocation5 + $0x50] sm:$0xff]
    %v84 = vld [vmem:[#allocation5 + $0x58] sm:$0xff]
    %v85 = vld [vmem:[#allocation5 + $0x60] sm:$0xff]
    %v86 = vld [vmem:[#allocation5 + $0x68] sm:$0xff]
    %v87 = vld [vmem:[#allocation5 + $0x70] sm:$0xff]
    %v88 = vld [vmem:[#allocation5 + $0x78] sm:$0xff]
    %v89 = vld [vmem:[#allocation5 + $0x80] sm:$0xff]
    %v90 = vld [vmem:[#allocation5 + $0x88] sm:$0xff]
    %v91 = vld [vmem:[#allocation5 + $0x90] sm:$0xff]
    %v92 = vld [vmem:[#allocation5 + $0x98] sm:$0xff]
    %v93 = vld [vmem:[#allocation5 + $0xa0] sm:$0xff]
    %v94 = vld [vmem:[#allocation5 + $0xa8] sm:$0xff]
    %v95 = vld [vmem:[#allocation5 + $0xb0] sm:$0xff]
    %v96 = vld [vmem:[#allocation5 + $0xb8] sm:$0xff]
    %v97 = vld [vmem:[#allocation5 + $0xc0] sm:$0xff]
    %v98 = vld [vmem:[#allocation5 + $0xc8] sm:$0xff]
    %v99 = vld [vmem:[#allocation5 + $0xd0] sm:$0xff]
    %v100 = vld [vmem:[#allocation5 + $0xd8] sm:$0xff]
    %v101 = vld [vmem:[#allocation5 + $0xe0] sm:$0xff]
    %v102 = vld [vmem:[#allocation5 + $0xe8] sm:$0xff]
    %v103 = vld [vmem:[#allocation5 + $0xf0] sm:$0xff]
    %v104 = vld [vmem:[#allocation5 + $0xf8] sm:$0xff]
    %v105 = vld [vmem:[#allocation5 + $0x100] sm:$0xff]
    %v106 = vld [vmem:[#allocation5 + $0x108] sm:$0xff]
    %v107 = vld [vmem:[#allocation5 + $0x110] sm:$0xff]
    %v108 = vld [vmem:[#allocation5 + $0x118] sm:$0xff]
    %v109 = vld [vmem:[#allocation5 + $0x120] sm:$0xff]
    %v110 = vld [vmem:[#allocation5 + $0x128] sm:$0xff]
    %v111 = vld [vmem:[#allocation5 + $0x130] sm:$0xff]
    %v112 = vld [vmem:[#allocation5 + $0x138] sm:$0xff]
    %v113 = vld [vmem:[#allocation5 + $0x140] sm:$0xff]
    %v114 = vld [vmem:[#allocation5 + $0x148] sm:$0xff]
    %v115 = vld [vmem:[#allocation5 + $0x150] sm:$0xff]
    %v116 = vld [vmem:[#allocation5 + $0x158] sm:$0xff]
    %v117 = vld [vmem:[#allocation5 + $0x160] sm:$0xff]
    %v118 = vld [vmem:[#allocation5 + $0x168] sm:$0xff]
    %v119 = vld [vmem:[#allocation5 + $0x170] sm:$0xff]
    %v120 = vld [vmem:[#allocation5 + $0x178] sm:$0xff]
    %v121 = vld [vmem:[#allocation5 + $0x180] sm:$0xff]
    %v122 = vld [vmem:[#allocation5 + $0x188] sm:$0xff]
    %v123 = vld [vmem:[#allocation5 + $0x190] sm:$0xff]
    %v124 = vld [vmem:[#allocation5 + $0x198] sm:$0xff]
    %v125 = vld [vmem:[#allocation5 + $0x1a0] sm:$0xff]
    %v126 = vld [vmem:[#allocation5 + $0x1a8] sm:$0xff]
    %v127 = vld [vmem:[#allocation5 + $0x1b0] sm:$0xff]
    %v128 = vld [vmem:[#allocation5 + $0x1b8] sm:$0xff]
    %v129 = vld [vmem:[#allocation5 + $0x1c0] sm:$0xff]
    %v130 = vld [vmem:[#allocation5 + $0x1c8] sm:$0xff]
    %v131 = vld [vmem:[#allocation5 + $0x1d0] sm:$0xff]
    %v132 = vld [vmem:[#allocation5 + $0x1d8] sm:$0xff]
    %v133 = vld [vmem:[#allocation5 + $0x1e0] sm:$0xff]
    %v134 = vld [vmem:[#allocation5 + $0x1e8] sm:$0xff]
    %v135 = vld [vmem:[#allocation5 + $0x1f0] sm:$0xff]
    %v136 = vld [vmem:[#allocation5 + $0x1f8] sm:$0xff]
    %v137 = vld [vmem:[#allocation5 + $0x200] sm:$0xff]
    %v138 = vld [vmem:[#allocation5 + $0x208] sm:$0xff]
    %v139 = vld [vmem:[#allocation5 + $0x210] sm:$0xff]
    %v140 = vld [vmem:[#allocation5 + $0x218] sm:$0xff]
    %v141 = vld [vmem:[#allocation5 + $0x220] sm:$0xff]
    %v142 = vld [vmem:[#allocation5 + $0x228] sm:$0xff]
    %v143 = vld [vmem:[#allocation5 + $0x230] sm:$0xff]
    %v144 = vld [vmem:[#allocation5 + $0x238] sm:$0xff]
    %v145 = vld [vmem:[#allocation5 + $0x240] sm:$0xff]
    %v146 = vld [vmem:[#allocation5 + $0x248] sm:$0xff]
    %v147 = vld [vmem:[#allocation5 + $0x250] sm:$0xff]
    %v148 = vld [vmem:[#allocation5 + $0x258] sm:$0xff]
    %v149 = vld [vmem:[#allocation5 + $0x260] sm:$0xff]
    %v150 = vld [vmem:[#allocation5 + $0x268] sm:$0xff]
    %v151 = vld [vmem:[#allocation5 + $0x270] sm:$0xff]
    %v152 = vld [vmem:[#allocation5 + $0x278] sm:$0xff]
    %v153 = vld [vmem:[#allocation5 + $0x280] sm:$0xff]
    %v154 = vld [vmem:[#allocation5 + $0x288] sm:$0xff]
    %v155 = vld [vmem:[#allocation5 + $0x290] sm:$0xff]
    %v156 = vld [vmem:[#allocation5 + $0x298] sm:$0xff]
    %v157 = vld [vmem:[#allocation5 + $0x2a0] sm:$0xff]
    %v158 = vld [vmem:[#allocation5 + $0x2a8] sm:$0xff]
    %v159 = vld [vmem:[#allocation5 + $0x2b0] sm:$0xff]
    %v160 = vld [vmem:[#allocation5 + $0x2b8] sm:$0xff]
    %v161 = vld [vmem:[#allocation5 + $0x2c0] sm:$0xff]
    %v162 = vld [vmem:[#allocation5 + $0x2c8] sm:$0xff]
    %v163 = vld [vmem:[#allocation5 + $0x2d0] sm:$0xff]
    %v164 = vld [vmem:[#allocation5 + $0x2d8] sm:$0xff]
    %v165 = vld [vmem:[#allocation5 + $0x2e0] sm:$0xff]
    %v166 = vld [vmem:[#allocation5 + $0x2e8] sm:$0xff]
    %v167 = vld [vmem:[#allocation5 + $0x2f0] sm:$0xff]
    %v168 = vld [vmem:[#allocation5 + $0x2f8] sm:$0xff]
    %v169 = vld [vmem:[#allocation5 + $0x300] sm:$0xff]
    %v170 = vld [vmem:[#allocation5 + $0x308] sm:$0xff]
    %v171 = vld [vmem:[#allocation5 + $0x310] sm:$0xff]
    %v172 = vld [vmem:[#allocation5 + $0x318] sm:$0xff]
    %v173 = vld [vmem:[#allocation5 + $0x320] sm:$0xff]
    %v174 = vld [vmem:[#allocation5 + $0x328] sm:$0xff]
    %v175 = vld [vmem:[#allocation5 + $0x330] sm:$0xff]
    %v176 = vld [vmem:[#allocation5 + $0x338] sm:$0xff]
    %v177 = vld [vmem:[#allocation5 + $0x340] sm:$0xff]
    %v178 = vld [vmem:[#allocation5 + $0x348] sm:$0xff]
    %v179 = vld [vmem:[#allocation5 + $0x350] sm:$0xff]
    %v180 = vld [vmem:[#allocation5 + $0x358] sm:$0xff]
    %v181 = vld [vmem:[#allocation5 + $0x360] sm:$0xff]
    %v182 = vld [vmem:[#allocation5 + $0x368] sm:$0xff]
    %v183 = vld [vmem:[#allocation5 + $0x370] sm:$0xff]
    %v184 = vld [vmem:[#allocation5 + $0x378] sm:$0xff]
    %v185 = vld [vmem:[#allocation5 + $0x380] sm:$0xff]
    %v186 = vld [vmem:[#allocation5 + $0x388] sm:$0xff]
    %v187 = vld [vmem:[#allocation5 + $0x390] sm:$0xff]
    %v188 = vld [vmem:[#allocation5 + $0x398] sm:$0xff]
    %v189 = vld [vmem:[#allocation5 + $0x3a0] sm:$0xff]
    %v190 = vld [vmem:[#allocation5 + $0x3a8] sm:$0xff]
    %v191 = vld [vmem:[#allocation5 + $0x3b0] sm:$0xff]
    %v192 = vld [vmem:[#allocation5 + $0x3b8] sm:$0xff]
    %v193 = vld [vmem:[#allocation5 + $0x3c0] sm:$0xff]
    %v194 = vld [vmem:[#allocation5 + $0x3c8] sm:$0xff]
    %v195 = vld [vmem:[#allocation5 + $0x3d0] sm:$0xff]
    %v196 = vld [vmem:[#allocation5 + $0x3d8] sm:$0xff]
    %v197 = vld [vmem:[#allocation5 + $0x3e0] sm:$0xff]
    %v198 = vld [vmem:[#allocation5 + $0x3e8] sm:$0xff]
    %v199 = vld [vmem:[#allocation5 + $0x3f0] sm:$0xff]
    %v200 = vld [vmem:[#allocation5 + $0x3f8] sm:$0xff]
    %v203 = vunpack.c.l.s4 1966171168
    %v204 = vunpack.c.0.s8 %v203
    %v205 = vlaneseq
    %v206 = vshrl.u32 %v205, 7
    %v207 = vsub.s32 %v204, %v206
    %v208 = vrot.slane %v72, %v207
    %v209 = vcombine.high %v208, %v208
    %v211 = vunpack.c.l.s4 1966171168
    %v212 = vunpack.c.0.s8 %v211
    %v213 = vlaneseq
    %v214 = vshrl.u32 %v213, 7
    %v215 = vsub.s32 %v212, %v214
    %v216 = vrot.slane %v208, %v215
    %v218 = vunpack.c.l.s4 1966171168
    %v219 = vunpack.c.0.s8 %v218
    %v220 = vlaneseq
    %v221 = vshrl.u32 %v220, 7
    %v222 = vsub.s32 %v219, %v221
    %v223 = vrot.slane %v209, %v222
    %v224 = vcombine.high %v216, %v216
    %v225 = vcombine.high %v223, %v223
    %v358 = vunpack.c.l.b16 %v73
    %v359 = vunpack.c.h.b16 %v73
    %v360 = vunpack.c.l.b16 %v74
    %v361 = vunpack.c.h.b16 %v74
    %v362 = vunpack.c.l.b16 %v75
    %v363 = vunpack.c.h.b16 %v75
    %v364 = vunpack.c.l.b16 %v76
    %v365 = vunpack.c.h.b16 %v76
    %v366 = vunpack.c.l.b16 %v77
    %v367 = vunpack.c.h.b16 %v77
    %v368 = vunpack.c.l.b16 %v78
    %v369 = vunpack.c.h.b16 %v78
    %v370 = vunpack.c.l.b16 %v79
    %v371 = vunpack.c.h.b16 %v79
    %v372 = vunpack.c.l.b16 %v80
    %v373 = vunpack.c.h.b16 %v80
    %v374 = vunpack.c.l.b16 %v81
    %v375 = vunpack.c.h.b16 %v81
    %v376 = vunpack.c.l.b16 %v82
    %v377 = vunpack.c.h.b16 %v82
    %v378 = vunpack.c.l.b16 %v83
    %v379 = vunpack.c.h.b16 %v83
    %v380 = vunpack.c.l.b16 %v84
    %v381 = vunpack.c.h.b16 %v84
    %v382 = vunpack.c.l.b16 %v85
    %v383 = vunpack.c.h.b16 %v85
    %v384 = vunpack.c.l.b16 %v86
    %v385 = vunpack.c.h.b16 %v86
    %v386 = vunpack.c.l.b16 %v87
    %v387 = vunpack.c.h.b16 %v87
    %v388 = vunpack.c.l.b16 %v88
    %v389 = vunpack.c.h.b16 %v88
    %v390 = vunpack.c.l.b16 %v89
    %v391 = vunpack.c.h.b16 %v89
    %v392 = vunpack.c.l.b16 %v90
    %v393 = vunpack.c.h.b16 %v90
    %v394 = vunpack.c.l.b16 %v91
    %v395 = vunpack.c.h.b16 %v91
    %v396 = vunpack.c.l.b16 %v92
    %v397 = vunpack.c.h.b16 %v92
    %v398 = vunpack.c.l.b16 %v93
    %v399 = vunpack.c.h.b16 %v93
    %v400 = vunpack.c.l.b16 %v94
    %v401 = vunpack.c.h.b16 %v94
    %v402 = vunpack.c.l.b16 %v95
    %v403 = vunpack.c.h.b16 %v95
    %v404 = vunpack.c.l.b16 %v96
    %v405 = vunpack.c.h.b16 %v96
    %v406 = vunpack.c.l.b16 %v97
    %v407 = vunpack.c.h.b16 %v97
    %v408 = vunpack.c.l.b16 %v98
    %v409 = vunpack.c.h.b16 %v98
    %v410 = vunpack.c.l.b16 %v99
    %v411 = vunpack.c.h.b16 %v99
    %v412 = vunpack.c.l.b16 %v100
    %v413 = vunpack.c.h.b16 %v100
    %v414 = vunpack.c.l.b16 %v101
    %v415 = vunpack.c.h.b16 %v101
    %v416 = vunpack.c.l.b16 %v102
    %v417 = vunpack.c.h.b16 %v102
    %v418 = vunpack.c.l.b16 %v103
    %v419 = vunpack.c.h.b16 %v103
    %v420 = vunpack.c.l.b16 %v104
    %v421 = vunpack.c.h.b16 %v104
    %v422 = vunpack.c.l.b16 %v105
    %v423 = vunpack.c.h.b16 %v105
    %v424 = vunpack.c.l.b16 %v106
    %v425 = vunpack.c.h.b16 %v106
    %v426 = vunpack.c.l.b16 %v107
    %v427 = vunpack.c.h.b16 %v107
    %v428 = vunpack.c.l.b16 %v108
    %v429 = vunpack.c.h.b16 %v108
    %v430 = vunpack.c.l.b16 %v109
    %v431 = vunpack.c.h.b16 %v109
    %v432 = vunpack.c.l.b16 %v110
    %v433 = vunpack.c.h.b16 %v110
    %v434 = vunpack.c.l.b16 %v111
    %v435 = vunpack.c.h.b16 %v111
    %v436 = vunpack.c.l.b16 %v112
    %v437 = vunpack.c.h.b16 %v112
    %v438 = vunpack.c.l.b16 %v113
    %v439 = vunpack.c.h.b16 %v113
    %v440 = vunpack.c.l.b16 %v114
    %v441 = vunpack.c.h.b16 %v114
    %v442 = vunpack.c.l.b16 %v115
    %v443 = vunpack.c.h.b16 %v115
    %v444 = vunpack.c.l.b16 %v116
    %v445 = vunpack.c.h.b16 %v116
    %v446 = vunpack.c.l.b16 %v117
    %v447 = vunpack.c.h.b16 %v117
    %v448 = vunpack.c.l.b16 %v118
    %v449 = vunpack.c.h.b16 %v118
    %v450 = vunpack.c.l.b16 %v119
    %v451 = vunpack.c.h.b16 %v119
    %v452 = vunpack.c.l.b16 %v120
    %v453 = vunpack.c.h.b16 %v120
    %v454 = vunpack.c.l.b16 %v121
    %v455 = vunpack.c.h.b16 %v121
    %v456 = vunpack.c.l.b16 %v122
    %v457 = vunpack.c.h.b16 %v122
    %v458 = vunpack.c.l.b16 %v123
    %v459 = vunpack.c.h.b16 %v123
    %v460 = vunpack.c.l.b16 %v124
    %v461 = vunpack.c.h.b16 %v124
    %v462 = vunpack.c.l.b16 %v125
    %v463 = vunpack.c.h.b16 %v125
    %v464 = vunpack.c.l.b16 %v126
    %v465 = vunpack.c.h.b16 %v126
    %v466 = vunpack.c.l.b16 %v127
    %v467 = vunpack.c.h.b16 %v127
    %v468 = vunpack.c.l.b16 %v128
    %v469 = vunpack.c.h.b16 %v128
    %v470 = vunpack.c.l.b16 %v129
    %v471 = vunpack.c.h.b16 %v129
    %v472 = vunpack.c.l.b16 %v130
    %v473 = vunpack.c.h.b16 %v130
    %v474 = vunpack.c.l.b16 %v131
    %v475 = vunpack.c.h.b16 %v131
    %v476 = vunpack.c.l.b16 %v132
    %v477 = vunpack.c.h.b16 %v132
    %v478 = vunpack.c.l.b16 %v133
    %v479 = vunpack.c.h.b16 %v133
    %v480 = vunpack.c.l.b16 %v134
    %v481 = vunpack.c.h.b16 %v134
    %v482 = vunpack.c.l.b16 %v135
    %v483 = vunpack.c.h.b16 %v135
    %v484 = vunpack.c.l.b16 %v136
    %v485 = vunpack.c.h.b16 %v136
    %v486 = vunpack.c.l.b16 %v137
    %v487 = vunpack.c.h.b16 %v137
    %v488 = vunpack.c.l.b16 %v138
    %v489 = vunpack.c.h.b16 %v138
    %v490 = vunpack.c.l.b16 %v139
    %v491 = vunpack.c.h.b16 %v139
    %v492 = vunpack.c.l.b16 %v140
    %v493 = vunpack.c.h.b16 %v140
    %v494 = vunpack.c.l.b16 %v141
    %v495 = vunpack.c.h.b16 %v141
    %v496 = vunpack.c.l.b16 %v142
    %v497 = vunpack.c.h.b16 %v142
    %v498 = vunpack.c.l.b16 %v143
    %v499 = vunpack.c.h.b16 %v143
    %v500 = vunpack.c.l.b16 %v144
    %v501 = vunpack.c.h.b16 %v144
    %v502 = vunpack.c.l.b16 %v145
    %v503 = vunpack.c.h.b16 %v145
    %v504 = vunpack.c.l.b16 %v146
    %v505 = vunpack.c.h.b16 %v146
    %v506 = vunpack.c.l.b16 %v147
    %v507 = vunpack.c.h.b16 %v147
    %v508 = vunpack.c.l.b16 %v148
    %v509 = vunpack.c.h.b16 %v148
    %v510 = vunpack.c.l.b16 %v149
    %v511 = vunpack.c.h.b16 %v149
    %v512 = vunpack.c.l.b16 %v150
    %v513 = vunpack.c.h.b16 %v150
    %v514 = vunpack.c.l.b16 %v151
    %v515 = vunpack.c.h.b16 %v151
    %v516 = vunpack.c.l.b16 %v152
    %v517 = vunpack.c.h.b16 %v152
    %v518 = vunpack.c.l.b16 %v153
    %v519 = vunpack.c.h.b16 %v153
    %v520 = vunpack.c.l.b16 %v154
    %v521 = vunpack.c.h.b16 %v154
    %v522 = vunpack.c.l.b16 %v155
    %v523 = vunpack.c.h.b16 %v155
    %v524 = vunpack.c.l.b16 %v156
    %v525 = vunpack.c.h.b16 %v156
    %v526 = vunpack.c.l.b16 %v157
    %v527 = vunpack.c.h.b16 %v157
    %v528 = vunpack.c.l.b16 %v158
    %v529 = vunpack.c.h.b16 %v158
    %v530 = vunpack.c.l.b16 %v159
    %v531 = vunpack.c.h.b16 %v159
    %v532 = vunpack.c.l.b16 %v160
    %v533 = vunpack.c.h.b16 %v160
    %v534 = vunpack.c.l.b16 %v161
    %v535 = vunpack.c.h.b16 %v161
    %v536 = vunpack.c.l.b16 %v162
    %v537 = vunpack.c.h.b16 %v162
    %v538 = vunpack.c.l.b16 %v163
    %v539 = vunpack.c.h.b16 %v163
    %v540 = vunpack.c.l.b16 %v164
    %v541 = vunpack.c.h.b16 %v164
    %v542 = vunpack.c.l.b16 %v165
    %v543 = vunpack.c.h.b16 %v165
    %v544 = vunpack.c.l.b16 %v166
    %v545 = vunpack.c.h.b16 %v166
    %v546 = vunpack.c.l.b16 %v167
    %v547 = vunpack.c.h.b16 %v167
    %v548 = vunpack.c.l.b16 %v168
    %v549 = vunpack.c.h.b16 %v168
    %v550 = vunpack.c.l.b16 %v169
    %v551 = vunpack.c.h.b16 %v169
    %v552 = vunpack.c.l.b16 %v170
    %v553 = vunpack.c.h.b16 %v170
    %v554 = vunpack.c.l.b16 %v171
    %v555 = vunpack.c.h.b16 %v171
    %v556 = vunpack.c.l.b16 %v172
    %v557 = vunpack.c.h.b16 %v172
    %v558 = vunpack.c.l.b16 %v173
    %v559 = vunpack.c.h.b16 %v173
    %v560 = vunpack.c.l.b16 %v174
    %v561 = vunpack.c.h.b16 %v174
    %v562 = vunpack.c.l.b16 %v175
    %v563 = vunpack.c.h.b16 %v175
    %v564 = vunpack.c.l.b16 %v176
    %v565 = vunpack.c.h.b16 %v176
    %v566 = vunpack.c.l.b16 %v177
    %v567 = vunpack.c.h.b16 %v177
    %v568 = vunpack.c.l.b16 %v178
    %v569 = vunpack.c.h.b16 %v178
    %v570 = vunpack.c.l.b16 %v179
    %v571 = vunpack.c.h.b16 %v179
    %v572 = vunpack.c.l.b16 %v180
    %v573 = vunpack.c.h.b16 %v180
    %v574 = vunpack.c.l.b16 %v181
    %v575 = vunpack.c.h.b16 %v181
    %v576 = vunpack.c.l.b16 %v182
    %v577 = vunpack.c.h.b16 %v182
    %v578 = vunpack.c.l.b16 %v183
    %v579 = vunpack.c.h.b16 %v183
    %v580 = vunpack.c.l.b16 %v184
    %v581 = vunpack.c.h.b16 %v184
    %v582 = vunpack.c.l.b16 %v185
    %v583 = vunpack.c.h.b16 %v185
    %v584 = vunpack.c.l.b16 %v186
    %v585 = vunpack.c.h.b16 %v186
    %v586 = vunpack.c.l.b16 %v187
    %v587 = vunpack.c.h.b16 %v187
    %v588 = vunpack.c.l.b16 %v188
    %v589 = vunpack.c.h.b16 %v188
    %v590 = vunpack.c.l.b16 %v189
    %v591 = vunpack.c.h.b16 %v189
    %v592 = vunpack.c.l.b16 %v190
    %v593 = vunpack.c.h.b16 %v190
    %v594 = vunpack.c.l.b16 %v191
    %v595 = vunpack.c.h.b16 %v191
    %v596 = vunpack.c.l.b16 %v192
    %v597 = vunpack.c.h.b16 %v192
    %v598 = vunpack.c.l.b16 %v193
    %v599 = vunpack.c.h.b16 %v193
    %v600 = vunpack.c.l.b16 %v194
    %v601 = vunpack.c.h.b16 %v194
    %v602 = vunpack.c.l.b16 %v195
    %v603 = vunpack.c.h.b16 %v195
    %v604 = vunpack.c.l.b16 %v196
    %v605 = vunpack.c.h.b16 %v196
    %v606 = vunpack.c.l.b16 %v197
    %v607 = vunpack.c.h.b16 %v197
    %v608 = vunpack.c.l.b16 %v198
    %v609 = vunpack.c.h.b16 %v198
    %v610 = vunpack.c.l.b16 %v199
    %v611 = vunpack.c.h.b16 %v199
    %v612 = vunpack.c.l.b16 %v200
    %v613 = vunpack.c.h.b16 %v200
    %v614 = vpack.c.b16 %v362, %v358
    %v615 = vpack.c.b16 %v363, %v359
    %v616 = vpack.c.b16 %v364, %v360
    %v617 = vpack.c.b16 %v365, %v361
    %v618 = vpack.c.b16 %v370, %v366
    %v619 = vpack.c.b16 %v371, %v367
    %v620 = vpack.c.b16 %v372, %v368
    %v621 = vpack.c.b16 %v373, %v369
    %v622 = vpack.c.b16 %v378, %v374
    %v623 = vpack.c.b16 %v379, %v375
    %v624 = vpack.c.b16 %v380, %v376
    %v625 = vpack.c.b16 %v381, %v377
    %v626 = vpack.c.b16 %v386, %v382
    %v627 = vpack.c.b16 %v387, %v383
    %v628 = vpack.c.b16 %v388, %v384
    %v629 = vpack.c.b16 %v389, %v385
    %v630 = vpack.c.b16 %v394, %v390
    %v631 = vpack.c.b16 %v395, %v391
    %v632 = vpack.c.b16 %v396, %v392
    %v633 = vpack.c.b16 %v397, %v393
    %v634 = vpack.c.b16 %v402, %v398
    %v635 = vpack.c.b16 %v403, %v399
    %v636 = vpack.c.b16 %v404, %v400
    %v637 = vpack.c.b16 %v405, %v401
    %v638 = vpack.c.b16 %v410, %v406
    %v639 = vpack.c.b16 %v411, %v407
    %v640 = vpack.c.b16 %v412, %v408
    %v641 = vpack.c.b16 %v413, %v409
    %v642 = vpack.c.b16 %v418, %v414
    %v643 = vpack.c.b16 %v419, %v415
    %v644 = vpack.c.b16 %v420, %v416
    %v645 = vpack.c.b16 %v421, %v417
    %v646 = vpack.c.b16 %v426, %v422
    %v647 = vpack.c.b16 %v427, %v423
    %v648 = vpack.c.b16 %v428, %v424
    %v649 = vpack.c.b16 %v429, %v425
    %v650 = vpack.c.b16 %v434, %v430
    %v651 = vpack.c.b16 %v435, %v431
    %v652 = vpack.c.b16 %v436, %v432
    %v653 = vpack.c.b16 %v437, %v433
    %v654 = vpack.c.b16 %v442, %v438
    %v655 = vpack.c.b16 %v443, %v439
    %v656 = vpack.c.b16 %v444, %v440
    %v657 = vpack.c.b16 %v445, %v441
    %v658 = vpack.c.b16 %v450, %v446
    %v659 = vpack.c.b16 %v451, %v447
    %v660 = vpack.c.b16 %v452, %v448
    %v661 = vpack.c.b16 %v453, %v449
    %v662 = vpack.c.b16 %v458, %v454
    %v663 = vpack.c.b16 %v459, %v455
    %v664 = vpack.c.b16 %v460, %v456
    %v665 = vpack.c.b16 %v461, %v457
    %v666 = vpack.c.b16 %v466, %v462
    %v667 = vpack.c.b16 %v467, %v463
    %v668 = vpack.c.b16 %v468, %v464
    %v669 = vpack.c.b16 %v469, %v465
    %v670 = vpack.c.b16 %v474, %v470
    %v671 = vpack.c.b16 %v475, %v471
    %v672 = vpack.c.b16 %v476, %v472
    %v673 = vpack.c.b16 %v477, %v473
    %v674 = vpack.c.b16 %v482, %v478
    %v675 = vpack.c.b16 %v483, %v479
    %v676 = vpack.c.b16 %v484, %v480
    %v677 = vpack.c.b16 %v485, %v481
    %v678 = vpack.c.b16 %v490, %v486
    %v679 = vpack.c.b16 %v491, %v487
    %v680 = vpack.c.b16 %v492, %v488
    %v681 = vpack.c.b16 %v493, %v489
    %v682 = vpack.c.b16 %v498, %v494
    %v683 = vpack.c.b16 %v499, %v495
    %v684 = vpack.c.b16 %v500, %v496
    %v685 = vpack.c.b16 %v501, %v497
    %v686 = vpack.c.b16 %v506, %v502
    %v687 = vpack.c.b16 %v507, %v503
    %v688 = vpack.c.b16 %v508, %v504
    %v689 = vpack.c.b16 %v509, %v505
    %v690 = vpack.c.b16 %v514, %v510
    %v691 = vpack.c.b16 %v515, %v511
    %v692 = vpack.c.b16 %v516, %v512
    %v693 = vpack.c.b16 %v517, %v513
    %v694 = vpack.c.b16 %v522, %v518
    %v695 = vpack.c.b16 %v523, %v519
    %v696 = vpack.c.b16 %v524, %v520
    %v697 = vpack.c.b16 %v525, %v521
    %v698 = vpack.c.b16 %v530, %v526
    %v699 = vpack.c.b16 %v531, %v527
    %v700 = vpack.c.b16 %v532, %v528
    %v701 = vpack.c.b16 %v533, %v529
    %v702 = vpack.c.b16 %v538, %v534
    %v703 = vpack.c.b16 %v539, %v535
    %v704 = vpack.c.b16 %v540, %v536
    %v705 = vpack.c.b16 %v541, %v537
    %v706 = vpack.c.b16 %v546, %v542
    %v707 = vpack.c.b16 %v547, %v543
    %v708 = vpack.c.b16 %v548, %v544
    %v709 = vpack.c.b16 %v549, %v545
    %v710 = vpack.c.b16 %v554, %v550
    %v711 = vpack.c.b16 %v555, %v551
    %v712 = vpack.c.b16 %v556, %v552
    %v713 = vpack.c.b16 %v557, %v553
    %v714 = vpack.c.b16 %v562, %v558
    %v715 = vpack.c.b16 %v563, %v559
    %v716 = vpack.c.b16 %v564, %v560
    %v717 = vpack.c.b16 %v565, %v561
    %v718 = vpack.c.b16 %v570, %v566
    %v719 = vpack.c.b16 %v571, %v567
    %v720 = vpack.c.b16 %v572, %v568
    %v721 = vpack.c.b16 %v573, %v569
    %v722 = vpack.c.b16 %v578, %v574
    %v723 = vpack.c.b16 %v579, %v575
    %v724 = vpack.c.b16 %v580, %v576
    %v725 = vpack.c.b16 %v581, %v577
    %v726 = vpack.c.b16 %v586, %v582
    %v727 = vpack.c.b16 %v587, %v583
    %v728 = vpack.c.b16 %v588, %v584
    %v729 = vpack.c.b16 %v589, %v585
    %v730 = vpack.c.b16 %v594, %v590
    %v731 = vpack.c.b16 %v595, %v591
    %v732 = vpack.c.b16 %v596, %v592
    %v733 = vpack.c.b16 %v597, %v593
    %v734 = vpack.c.b16 %v602, %v598
    %v735 = vpack.c.b16 %v603, %v599
    %v736 = vpack.c.b16 %v604, %v600
    %v737 = vpack.c.b16 %v605, %v601
    %v738 = vpack.c.b16 %v610, %v606
    %v739 = vpack.c.b16 %v611, %v607
    %v740 = vpack.c.b16 %v612, %v608
    %v741 = vpack.c.b16 %v613, %v609
    %870 = vmatprep.subr.bf16.mxu0 %v643
    %871 = vmatpush1.bf16.msra.mxu0 %v642
    %872 = vmatprep.subr.bf16.mxu0 %v639
    %873 = vmatpush1.bf16.msra.mxu0 %v638
    %874 = vmatprep.subr.bf16.mxu0 %v635
    %875 = vmatpush1.bf16.msra.mxu0 %v634
    %876 = vmatprep.subr.bf16.mxu0 %v631
    %877 = vmatpush1.bf16.msra.mxu0 %v630
    %878 = vmatprep.subr.bf16.mxu0 %v627
    %879 = vmatpush1.bf16.msra.mxu0 %v626
    %880 = vmatprep.subr.bf16.mxu0 %v623
    %881 = vmatpush1.bf16.msra.mxu0 %v622
    %882 = vmatprep.subr.bf16.mxu0 %v619
    %883 = vmatpush1.bf16.msra.mxu0 %v618
    %884 = vmatprep.subr.bf16.mxu0 %v615
    %885 = vmatpush1.bf16.msra.mxu0 %v614
    %886 = vmatprep.subr.bf16.mxu0 %v675
    %887 = vmatpush2.bf16.msra.mxu0 %v674
    %888 = vmatprep.subr.bf16.mxu0 %v671
    %889 = vmatpush2.bf16.msra.mxu0 %v670
    %890 = vmatprep.subr.bf16.mxu0 %v667
    %891 = vmatpush2.bf16.msra.mxu0 %v666
    %892 = vmatprep.subr.bf16.mxu0 %v663
    %893 = vmatpush2.bf16.msra.mxu0 %v662
    %894 = vmatprep.subr.bf16.mxu0 %v659
    %895 = vmatpush2.bf16.msra.mxu0 %v658
    %896 = vmatprep.subr.bf16.mxu0 %v655
    %897 = vmatpush2.bf16.msra.mxu0 %v654
    %898 = vmatprep.subr.bf16.mxu0 %v651
    %899 = vmatpush2.bf16.msra.mxu0 %v650
    %900 = vmatprep.subr.bf16.mxu0 %v647
    %901 = vmatpush2.bf16.msra.mxu0 %v646
    %902 = vmatprep.mubr.bf16.mxu0 %v223
    %903 = vmatmul.mubr.bf16.gmra.mxu0 %v216
    %v904 = vpop.f32.mrf.mxu0
    %v905 = vadd.f32 0.0, %v904
    %v906 = vpop.f32.mrf.mxu0
    %v907 = vadd.f32 0.0, %v906
    %v908 = vpop.f32.mrf.mxu0
    %v909 = vpop.f32.mrf.mxu0
    %910 = vdwg.mxu0
    %911 = vmatprep.subr.bf16.mxu0 %v707
    %912 = vmatpush1.bf16.msra.mxu0 %v706
    %913 = vmatprep.subr.bf16.mxu0 %v703
    %914 = vmatpush1.bf16.msra.mxu0 %v702
    %915 = vmatprep.subr.bf16.mxu0 %v699
    %916 = vmatpush1.bf16.msra.mxu0 %v698
    %917 = vmatprep.subr.bf16.mxu0 %v695
    %918 = vmatpush1.bf16.msra.mxu0 %v694
    %919 = vmatprep.subr.bf16.mxu0 %v691
    %920 = vmatpush1.bf16.msra.mxu0 %v690
    %921 = vmatprep.subr.bf16.mxu0 %v687
    %922 = vmatpush1.bf16.msra.mxu0 %v686
    %923 = vmatprep.subr.bf16.mxu0 %v683
    %924 = vmatpush1.bf16.msra.mxu0 %v682
    %925 = vmatprep.subr.bf16.mxu0 %v679
    %926 = vmatpush1.bf16.msra.mxu0 %v678
    %927 = vmatprep.subr.bf16.mxu0 %v739
    %928 = vmatpush2.bf16.msra.mxu0 %v738
    %929 = vmatprep.subr.bf16.mxu0 %v735
    %930 = vmatpush2.bf16.msra.mxu0 %v734
    %931 = vmatprep.subr.bf16.mxu0 %v731
    %932 = vmatpush2.bf16.msra.mxu0 %v730
    %933 = vmatprep.subr.bf16.mxu0 %v727
    %934 = vmatpush2.bf16.msra.mxu0 %v726
    %935 = vmatprep.subr.bf16.mxu0 %v723
    %936 = vmatpush2.bf16.msra.mxu0 %v722
    %937 = vmatprep.subr.bf16.mxu0 %v719
    %938 = vmatpush2.bf16.msra.mxu0 %v718
    %939 = vmatprep.subr.bf16.mxu0 %v715
    %940 = vmatpush2.bf16.msra.mxu0 %v714
    %941 = vmatprep.subr.bf16.mxu0 %v711
    %942 = vmatpush2.bf16.msra.mxu0 %v710
    %943 = vmatprep.mubr.bf16.mxu0 %v225
    %944 = vmatmul.mubr.bf16.gmra.mxu0 %v224
    %v945 = vpop.f32.mrf.mxu0
    %v946 = vadd.f32 %v905, %v945
    %v947 = vpop.f32.mrf.mxu0
    %v948 = vadd.f32 %v907, %v947
    %v949 = vpop.f32.mrf.mxu0
    %v950 = vpop.f32.mrf.mxu0
    %951 = vdwg.mxu0
    %952 = vmatprep.subr.bf16.mxu0 %v645
    %953 = vmatpush1.bf16.msra.mxu0 %v644
    %954 = vmatprep.subr.bf16.mxu0 %v641
    %955 = vmatpush1.bf16.msra.mxu0 %v640
    %956 = vmatprep.subr.bf16.mxu0 %v637
    %957 = vmatpush1.bf16.msra.mxu0 %v636
    %958 = vmatprep.subr.bf16.mxu0 %v633
    %959 = vmatpush1.bf16.msra.mxu0 %v632
    %960 = vmatprep.subr.bf16.mxu0 %v629
    %961 = vmatpush1.bf16.msra.mxu0 %v628
    %962 = vmatprep.subr.bf16.mxu0 %v625
    %963 = vmatpush1.bf16.msra.mxu0 %v624
    %964 = vmatprep.subr.bf16.mxu0 %v621
    %965 = vmatpush1.bf16.msra.mxu0 %v620
    %966 = vmatprep.subr.bf16.mxu0 %v617
    %967 = vmatpush1.bf16.msra.mxu0 %v616
    %968 = vmatprep.subr.bf16.mxu0 %v677
    %969 = vmatpush2.bf16.msra.mxu0 %v676
    %970 = vmatprep.subr.bf16.mxu0 %v673
    %971 = vmatpush2.bf16.msra.mxu0 %v672
    %972 = vmatprep.subr.bf16.mxu0 %v669
    %973 = vmatpush2.bf16.msra.mxu0 %v668
    %974 = vmatprep.subr.bf16.mxu0 %v665
    %975 = vmatpush2.bf16.msra.mxu0 %v664
    %976 = vmatprep.subr.bf16.mxu0 %v661
    %977 = vmatpush2.bf16.msra.mxu0 %v660
    %978 = vmatprep.subr.bf16.mxu0 %v657
    %979 = vmatpush2.bf16.msra.mxu0 %v656
    %980 = vmatprep.subr.bf16.mxu0 %v653
    %981 = vmatpush2.bf16.msra.mxu0 %v652
    %982 = vmatprep.subr.bf16.mxu0 %v649
    %983 = vmatpush2.bf16.msra.mxu0 %v648
    %984 = vmatprep.mubr.bf16.mxu0 %v223
    %985 = vmatmul.mubr.bf16.gmra.mxu0 %v216
    %v986 = vpop.f32.mrf.mxu0
    %v987 = vadd.f32 0.0, %v986
    %v988 = vpop.f32.mrf.mxu0
    %v989 = vadd.f32 0.0, %v988
    %v990 = vpop.f32.mrf.mxu0
    %v991 = vpop.f32.mrf.mxu0
    %992 = vdwg.mxu0
    %993 = vmatprep.subr.bf16.mxu0 %v709
    %994 = vmatpush1.bf16.msra.mxu0 %v708
    %995 = vmatprep.subr.bf16.mxu0 %v705
    %996 = vmatpush1.bf16.msra.mxu0 %v704
    %997 = vmatprep.subr.bf16.mxu0 %v701
    %998 = vmatpush1.bf16.msra.mxu0 %v700
    %999 = vmatprep.subr.bf16.mxu0 %v697
    %1000 = vmatpush1.bf16.msra.mxu0 %v696
    %1001 = vmatprep.subr.bf16.mxu0 %v693
    %1002 = vmatpush1.bf16.msra.mxu0 %v692
    %1003 = vmatprep.subr.bf16.mxu0 %v689
    %1004 = vmatpush1.bf16.msra.mxu0 %v688
    %1005 = vmatprep.subr.bf16.mxu0 %v685
    %1006 = vmatpush1.bf16.msra.mxu0 %v684
    %1007 = vmatprep.subr.bf16.mxu0 %v681
    %1008 = vmatpush1.bf16.msra.mxu0 %v680
    %1009 = vmatprep.subr.bf16.mxu0 %v741
    %1010 = vmatpush2.bf16.msra.mxu0 %v740
    %1011 = vmatprep.subr.bf16.mxu0 %v737
    %1012 = vmatpush2.bf16.msra.mxu0 %v736
    %1013 = vmatprep.subr.bf16.mxu0 %v733
    %1014 = vmatpush2.bf16.msra.mxu0 %v732
    %1015 = vmatprep.subr.bf16.mxu0 %v729
    %1016 = vmatpush2.bf16.msra.mxu0 %v728
    %1017 = vmatprep.subr.bf16.mxu0 %v725
    %1018 = vmatpush2.bf16.msra.mxu0 %v724
    %1019 = vmatprep.subr.bf16.mxu0 %v721
    %1020 = vmatpush2.bf16.msra.mxu0 %v720
    %1021 = vmatprep.subr.bf16.mxu0 %v717
    %1022 = vmatpush2.bf16.msra.mxu0 %v716
    %1023 = vmatprep.subr.bf16.mxu0 %v713
    %1024 = vmatpush2.bf16.msra.mxu0 %v712
    %1025 = vmatprep.mubr.bf16.mxu0 %v225
    %1026 = vmatmul.mubr.bf16.gmra.mxu0 %v224
    %v1027 = vpop.f32.mrf.mxu0
    %v1028 = vadd.f32 %v987, %v1027
    %v1029 = vpop.f32.mrf.mxu0
    %v1030 = vadd.f32 %v989, %v1029
    %v1031 = vpop.f32.mrf.mxu0
    %v1032 = vpop.f32.mrf.mxu0
    %1033 = vdwg.mxu0
    %vm1034 = vcmask 1041408
    %v1035 = vsel %vm1034, %v946, 0.0
    %v1036 = vrot.slane %v1035, 4
    %v1037 = vadd.f32 %v1035, %v1036
    %v1038 = vrot.slane %v1037, 2
    %v1039 = vadd.f32 %v1037, %v1038
    %v1040 = vrot.slane %v1039, 1
    %v1041 = vadd.f32 %v1039, %v1040
    %v1042 = vsel %vm1034, %v948, 0.0
    %v1043 = vrot.slane %v1042, 4
    %v1044 = vadd.f32 %v1042, %v1043
    %v1045 = vrot.slane %v1044, 2
    %v1046 = vadd.f32 %v1044, %v1045
    %v1047 = vrot.slane %v1046, 1
    %v1048 = vadd.f32 %v1046, %v1047
    %v1049 = vsel %vm1034, %v1028, 0.0
    %v1050 = vrot.slane %v1049, 4
    %v1051 = vadd.f32 %v1049, %v1050
    %v1052 = vrot.slane %v1051, 2
    %v1053 = vadd.f32 %v1051, %v1052
    %v1054 = vrot.slane %v1053, 1
    %v1055 = vadd.f32 %v1053, %v1054
    %v1056 = vsel %vm1034, %v1030, 0.0
    %v1057 = vrot.slane %v1056, 4
    %v1058 = vadd.f32 %v1056, %v1057
    %v1059 = vrot.slane %v1058, 2
    %v1060 = vadd.f32 %v1058, %v1059
    %v1061 = vrot.slane %v1060, 1
    %v1062 = vadd.f32 %v1060, %v1061
    %v1063 = vrcp.pop 2.0
    %v1064 = vmul.f32 %v1041, %v1063
    %v1065 = vmul.f32 %v1048, %v1063
    %v1066 = vmul.f32 %v1055, %v1063
    %v1067 = vmul.f32 %v1062, %v1063
    %v1068 = vsub.f32 %v946, %v1064
    %v1069 = vsub.f32 %v948, %v1065
    %v1070 = vsub.f32 %v1028, %v1066
    %v1071 = vsub.f32 %v1030, %v1067
    %v1072 = vmul.f32 %v1068, %v1068
    %v1073 = vmul.f32 %v1069, %v1069
    %v1074 = vmul.f32 %v1070, %v1070
    %v1075 = vmul.f32 %v1071, %v1071
    %v1076 = vsel %vm1034, %v1072, 0.0
    %v1077 = vrot.slane %v1076, 4
    %v1078 = vadd.f32 %v1076, %v1077
    %v1079 = vrot.slane %v1078, 2
    %v1080 = vadd.f32 %v1078, %v1079
    %v1081 = vrot.slane %v1080, 1
    %v1082 = vadd.f32 %v1080, %v1081
    %v1083 = vsel %vm1034, %v1073, 0.0
    %v1084 = vrot.slane %v1083, 4
    %v1085 = vadd.f32 %v1083, %v1084
    %v1086 = vrot.slane %v1085, 2
    %v1087 = vadd.f32 %v1085, %v1086
    %v1088 = vrot.slane %v1087, 1
    %v1089 = vadd.f32 %v1087, %v1088
    %v1090 = vsel %vm1034, %v1074, 0.0
    %v1091 = vrot.slane %v1090, 4
    %v1092 = vadd.f32 %v1090, %v1091
    %v1093 = vrot.slane %v1092, 2
    %v1094 = vadd.f32 %v1092, %v1093
    %v1095 = vrot.slane %v1094, 1
    %v1096 = vadd.f32 %v1094, %v1095
    %v1097 = vsel %vm1034, %v1075, 0.0
    %v1098 = vrot.slane %v1097, 4
    %v1099 = vadd.f32 %v1097, %v1098
    %v1100 = vrot.slane %v1099, 2
    %v1101 = vadd.f32 %v1099, %v1100
    %v1102 = vrot.slane %v1101, 1
    %v1103 = vadd.f32 %v1101, %v1102
    %v1104 = vmul.f32 %v1082, %v1063
    %v1105 = vmul.f32 %v1089, %v1063
    %v1106 = vmul.f32 %v1096, %v1063
    %v1107 = vmul.f32 %v1103, %v1063
    %v1108 = vld [vmem:[#allocation7] ss:$2 sm:$0xf]
    %v1109 = vadd.f32 %v1104, 1e-05
    %v1110 = vadd.f32 %v1105, 1e-05
    %v1111 = vadd.f32 %v1106, 1e-05
    %v1112 = vadd.f32 %v1107, 1e-05
    %v1113 = vrsqrt.pop %v1109
    %v1114 = vrsqrt.pop %v1110
    %v1115 = vrsqrt.pop %v1111
    %v1116 = vrsqrt.pop %v1112
    %v1121 = vcombine.low %v1113, %v1114
    %v1122 = vcombine.low %v1115, %v1116
    %v1124 = vunpack.c.l.s4 1966171168
    %v1125 = vunpack.c.0.s8 %v1124
    %v1126 = vlaneseq
    %v1127 = vshrl.u32 %v1126, 7
    %v1128 = vsub.s32 %v1125, %v1127
    %v1129 = vrot.slane %v1121, %v1128
    %v1131 = vunpack.c.l.s4 1966171168
    %v1132 = vunpack.c.0.s8 %v1131
    %v1133 = vlaneseq
    %v1134 = vshrl.u32 %v1133, 7
    %v1135 = vsub.s32 %v1132, %v1134
    %v1136 = vrot.slane %v1122, %v1135
    %v1137 = vcombine.low %v1129, %v1136
    %v1139 = vunpack.c.l.s4 1966171168
    %v1140 = vunpack.c.0.s8 %v1139
    %v1141 = vlaneseq
    %v1142 = vshrl.u32 %v1141, 7
    %v1143 = vsub.s32 %v1140, %v1142
    %v1144 = vrot.slane %v1137, %v1143
    %v1146 = vmul.f32 %v1108, %v1144
    %s1147 = scalar_lea.vmem [#allocation7], 1
    %v1148 = vld [vmem:[%s1147] ss:$2 sm:$0xf]
    %v1150 = vlaneseq
    %v1151 = vshrl.u32 %v1150, 7
    %v1152 = vsub.s32 0, %v1151
    %v1153 = vrot.slane %v1146, %v1152
    %v1154 = vlaneseq
    %v1155 = vshrl.u32 %v1154, 7
    %v1156 = vsub.s32 1, %v1155
    %v1157 = vrot.slane %v1146, %v1156
    %v1158 = vlaneseq
    %v1159 = vshrl.u32 %v1158, 7
    %v1160 = vsub.s32 2, %v1159
    %v1161 = vrot.slane %v1146, %v1160
    %v1162 = vlaneseq
    %v1163 = vshrl.u32 %v1162, 7
    %v1164 = vsub.s32 3, %v1163
    %v1165 = vrot.slane %v1146, %v1164
    %v1170 = vmul.f32 %v1064, %v1153
    %v1171 = vmul.f32 %v1065, %v1157
    %v1172 = vmul.f32 %v1066, %v1161
    %v1173 = vmul.f32 %v1067, %v1165
    %v1178 = vcombine.low %v1170, %v1171
    %v1179 = vcombine.low %v1172, %v1173
    %v1181 = vunpack.c.l.s4 1966171168
    %v1182 = vunpack.c.0.s8 %v1181
    %v1183 = vlaneseq
    %v1184 = vshrl.u32 %v1183, 7
    %v1185 = vsub.s32 %v1182, %v1184
    %v1186 = vrot.slane %v1178, %v1185
    %v1188 = vunpack.c.l.s4 1966171168
    %v1189 = vunpack.c.0.s8 %v1188
    %v1190 = vlaneseq
    %v1191 = vshrl.u32 %v1190, 7
    %v1192 = vsub.s32 %v1189, %v1191
    %v1193 = vrot.slane %v1179, %v1192
    %v1194 = vcombine.low %v1186, %v1193
    %v1196 = vunpack.c.l.s4 1966171168
    %v1197 = vunpack.c.0.s8 %v1196
    %v1198 = vlaneseq
    %v1199 = vshrl.u32 %v1198, 7
    %v1200 = vsub.s32 %v1197, %v1199
    %v1201 = vrot.slane %v1194, %v1200
    %v1203 = vsub.f32 %v1148, %v1201
    %v1204 = vmul.f32 %v946, %v1153
    %v1205 = vmul.f32 %v948, %v1157
    %v1206 = vmul.f32 %v1028, %v1161
    %v1207 = vmul.f32 %v1030, %v1165
    %v1209 = vlaneseq
    %v1210 = vshrl.u32 %v1209, 7
    %v1211 = vsub.s32 0, %v1210
    %v1212 = vrot.slane %v1203, %v1211
    %v1213 = vlaneseq
    %v1214 = vshrl.u32 %v1213, 7
    %v1215 = vsub.s32 1, %v1214
    %v1216 = vrot.slane %v1203, %v1215
    %v1217 = vlaneseq
    %v1218 = vshrl.u32 %v1217, 7
    %v1219 = vsub.s32 2, %v1218
    %v1220 = vrot.slane %v1203, %v1219
    %v1221 = vlaneseq
    %v1222 = vshrl.u32 %v1221, 7
    %v1223 = vsub.s32 3, %v1222
    %v1224 = vrot.slane %v1203, %v1223
    %v1229 = vadd.f32 %v1204, %v1212
    %v1230 = vadd.f32 %v1205, %v1216
    %v1231 = vadd.f32 %v1206, %v1220
    %v1232 = vadd.f32 %v1207, %v1224
    %v1233 = vmax.f32 %v1229, 0.0
    %v1234 = vmax.f32 %v1230, 0.0
    %v1235 = vmax.f32 %v1231, 0.0
    %v1236 = vmax.f32 %v1232, 0.0
    %v1237 = vpack.c.bf16 %v1233, %v1233
    %v1238 = vpack.c.bf16 %v1234, %v1234
    %v1239 = vpack.c.bf16 %v1235, %v1235
    %v1240 = vpack.c.bf16 %v1236, %v1236
    %v1241 = vld [vmem:[#allocation8] sm:$0xff]
    %v1242 = vld [vmem:[#allocation8 + $0x8] sm:$0xff]
    %v1243 = vld [vmem:[#allocation8 + $0x10] sm:$0xff]
    %v1244 = vld [vmem:[#allocation8 + $0x18] sm:$0xff]
    %v1245 = vld [vmem:[#allocation8 + $0x20] sm:$0xff]
    %v1246 = vld [vmem:[#allocation8 + $0x28] sm:$0xff]
    %v1247 = vld [vmem:[#allocation8 + $0x30] sm:$0xff]
    %v1248 = vld [vmem:[#allocation8 + $0x38] sm:$0xff]
    %v1249 = vld [vmem:[#allocation8 + $0x40] sm:$0xff]
    %v1250 = vld [vmem:[#allocation8 + $0x48] sm:$0xff]
    %v1251 = vld [vmem:[#allocation8 + $0x50] sm:$0xff]
    %v1252 = vld [vmem:[#allocation8 + $0x58] sm:$0xff]
    %v1253 = vld [vmem:[#allocation8 + $0x60] sm:$0xff]
    %v1254 = vld [vmem:[#allocation8 + $0x68] sm:$0xff]
    %v1255 = vld [vmem:[#allocation8 + $0x70] sm:$0xff]
    %v1256 = vld [vmem:[#allocation8 + $0x78] sm:$0xff]
    %v1257 = vld [vmem:[#allocation8 + $0x80] sm:$0xff]
    %v1258 = vld [vmem:[#allocation8 + $0x88] sm:$0xff]
    %v1259 = vld [vmem:[#allocation8 + $0x90] sm:$0xff]
    %v1260 = vld [vmem:[#allocation8 + $0x98] sm:$0xff]
    %v1261 = vld [vmem:[#allocation8 + $0xa0] sm:$0xff]
    %v1262 = vld [vmem:[#allocation8 + $0xa8] sm:$0xff]
    %v1263 = vld [vmem:[#allocation8 + $0xb0] sm:$0xff]
    %v1264 = vld [vmem:[#allocation8 + $0xb8] sm:$0xff]
    %v1265 = vld [vmem:[#allocation8 + $0xc0] sm:$0xff]
    %v1266 = vld [vmem:[#allocation8 + $0xc8] sm:$0xff]
    %v1267 = vld [vmem:[#allocation8 + $0xd0] sm:$0xff]
    %v1268 = vld [vmem:[#allocation8 + $0xd8] sm:$0xff]
    %v1269 = vld [vmem:[#allocation8 + $0xe0] sm:$0xff]
    %v1270 = vld [vmem:[#allocation8 + $0xe8] sm:$0xff]
    %v1271 = vld [vmem:[#allocation8 + $0xf0] sm:$0xff]
    %v1272 = vld [vmem:[#allocation8 + $0xf8] sm:$0xff]
    %v1273 = vld [vmem:[#allocation8 + $0x100] sm:$0xff]
    %v1274 = vld [vmem:[#allocation8 + $0x108] sm:$0xff]
    %v1275 = vld [vmem:[#allocation8 + $0x110] sm:$0xff]
    %v1276 = vld [vmem:[#allocation8 + $0x118] sm:$0xff]
    %v1277 = vld [vmem:[#allocation8 + $0x120] sm:$0xff]
    %v1278 = vld [vmem:[#allocation8 + $0x128] sm:$0xff]
    %v1279 = vld [vmem:[#allocation8 + $0x130] sm:$0xff]
    %v1280 = vld [vmem:[#allocation8 + $0x138] sm:$0xff]
    %v1281 = vld [vmem:[#allocation8 + $0x140] sm:$0xff]
    %v1282 = vld [vmem:[#allocation8 + $0x148] sm:$0xff]
    %v1283 = vld [vmem:[#allocation8 + $0x150] sm:$0xff]
    %v1284 = vld [vmem:[#allocation8 + $0x158] sm:$0xff]
    %v1285 = vld [vmem:[#allocation8 + $0x160] sm:$0xff]
    %v1286 = vld [vmem:[#allocation8 + $0x168] sm:$0xff]
    %v1287 = vld [vmem:[#allocation8 + $0x170] sm:$0xff]
    %v1288 = vld [vmem:[#allocation8 + $0x178] sm:$0xff]
    %v1289 = vld [vmem:[#allocation8 + $0x180] sm:$0xff]
    %v1290 = vld [vmem:[#allocation8 + $0x188] sm:$0xff]
    %v1291 = vld [vmem:[#allocation8 + $0x190] sm:$0xff]
    %v1292 = vld [vmem:[#allocation8 + $0x198] sm:$0xff]
    %v1293 = vld [vmem:[#allocation8 + $0x1a0] sm:$0xff]
    %v1294 = vld [vmem:[#allocation8 + $0x1a8] sm:$0xff]
    %v1295 = vld [vmem:[#allocation8 + $0x1b0] sm:$0xff]
    %v1296 = vld [vmem:[#allocation8 + $0x1b8] sm:$0xff]
    %v1297 = vld [vmem:[#allocation8 + $0x1c0] sm:$0xff]
    %v1298 = vld [vmem:[#allocation8 + $0x1c8] sm:$0xff]
    %v1299 = vld [vmem:[#allocation8 + $0x1d0] sm:$0xff]
    %v1300 = vld [vmem:[#allocation8 + $0x1d8] sm:$0xff]
    %v1301 = vld [vmem:[#allocation8 + $0x1e0] sm:$0xff]
    %v1302 = vld [vmem:[#allocation8 + $0x1e8] sm:$0xff]
    %v1303 = vld [vmem:[#allocation8 + $0x1f0] sm:$0xff]
    %v1304 = vld [vmem:[#allocation8 + $0x1f8] sm:$0xff]
    %p1305 = scmp.eq.s32.totalorder 0, 0
    %v1306 = vld [vmem:[%s4] sm:$0x3]
    %s1307 = scalar_select %p1305, 1, 0
    %v1308 = vstv %s1307
    %vm1309 = vcmp.eq.s32.totalorder %v1308, 1
    %v1310 = vsel %vm1309, %v1306, 0.0
    %v1312 = vlaneseq
    %v1313 = vshrl.u32 %v1312, 7
    %v1314 = vsub.s32 0, %v1313
    %v1315 = vrot.slane %v1310, %v1314
    %v1316 = vlaneseq
    %v1317 = vshrl.u32 %v1316, 7
    %v1318 = vsub.s32 1, %v1317
    %v1319 = vrot.slane %v1310, %v1318
    %v1386 = vunpack.c.l.b16 %v1241
    %v1387 = vunpack.c.h.b16 %v1241
    %v1388 = vunpack.c.l.b16 %v1242
    %v1389 = vunpack.c.h.b16 %v1242
    %v1390 = vunpack.c.l.b16 %v1243
    %v1391 = vunpack.c.h.b16 %v1243
    %v1392 = vunpack.c.l.b16 %v1244
    %v1393 = vunpack.c.h.b16 %v1244
    %v1394 = vunpack.c.l.b16 %v1245
    %v1395 = vunpack.c.h.b16 %v1245
    %v1396 = vunpack.c.l.b16 %v1246
    %v1397 = vunpack.c.h.b16 %v1246
    %v1398 = vunpack.c.l.b16 %v1247
    %v1399 = vunpack.c.h.b16 %v1247
    %v1400 = vunpack.c.l.b16 %v1248
    %v1401 = vunpack.c.h.b16 %v1248
    %v1402 = vunpack.c.l.b16 %v1249
    %v1403 = vunpack.c.h.b16 %v1249
    %v1404 = vunpack.c.l.b16 %v1250
    %v1405 = vunpack.c.h.b16 %v1250
    %v1406 = vunpack.c.l.b16 %v1251
    %v1407 = vunpack.c.h.b16 %v1251
    %v1408 = vunpack.c.l.b16 %v1252
    %v1409 = vunpack.c.h.b16 %v1252
    %v1410 = vunpack.c.l.b16 %v1253
    %v1411 = vunpack.c.h.b16 %v1253
    %v1412 = vunpack.c.l.b16 %v1254
    %v1413 = vunpack.c.h.b16 %v1254
    %v1414 = vunpack.c.l.b16 %v1255
    %v1415 = vunpack.c.h.b16 %v1255
    %v1416 = vunpack.c.l.b16 %v1256
    %v1417 = vunpack.c.h.b16 %v1256
    %v1418 = vunpack.c.l.b16 %v1257
    %v1419 = vunpack.c.h.b16 %v1257
    %v1420 = vunpack.c.l.b16 %v1258
    %v1421 = vunpack.c.h.b16 %v1258
    %v1422 = vunpack.c.l.b16 %v1259
    %v1423 = vunpack.c.h.b16 %v1259
    %v1424 = vunpack.c.l.b16 %v1260
    %v1425 = vunpack.c.h.b16 %v1260
    %v1426 = vunpack.c.l.b16 %v1261
    %v1427 = vunpack.c.h.b16 %v1261
    %v1428 = vunpack.c.l.b16 %v1262
    %v1429 = vunpack.c.h.b16 %v1262
    %v1430 = vunpack.c.l.b16 %v1263
    %v1431 = vunpack.c.h.b16 %v1263
    %v1432 = vunpack.c.l.b16 %v1264
    %v1433 = vunpack.c.h.b16 %v1264
    %v1434 = vunpack.c.l.b16 %v1265
    %v1435 = vunpack.c.h.b16 %v1265
    %v1436 = vunpack.c.l.b16 %v1266
    %v1437 = vunpack.c.h.b16 %v1266
    %v1438 = vunpack.c.l.b16 %v1267
    %v1439 = vunpack.c.h.b16 %v1267
    %v1440 = vunpack.c.l.b16 %v1268
    %v1441 = vunpack.c.h.b16 %v1268
    %v1442 = vunpack.c.l.b16 %v1269
    %v1443 = vunpack.c.h.b16 %v1269
    %v1444 = vunpack.c.l.b16 %v1270
    %v1445 = vunpack.c.h.b16 %v1270
    %v1446 = vunpack.c.l.b16 %v1271
    %v1447 = vunpack.c.h.b16 %v1271
    %v1448 = vunpack.c.l.b16 %v1272
    %v1449 = vunpack.c.h.b16 %v1272
    %v1450 = vunpack.c.l.b16 %v1273
    %v1451 = vunpack.c.h.b16 %v1273
    %v1452 = vunpack.c.l.b16 %v1274
    %v1453 = vunpack.c.h.b16 %v1274
    %v1454 = vunpack.c.l.b16 %v1275
    %v1455 = vunpack.c.h.b16 %v1275
    %v1456 = vunpack.c.l.b16 %v1276
    %v1457 = vunpack.c.h.b16 %v1276
    %v1458 = vunpack.c.l.b16 %v1277
    %v1459 = vunpack.c.h.b16 %v1277
    %v1460 = vunpack.c.l.b16 %v1278
    %v1461 = vunpack.c.h.b16 %v1278
    %v1462 = vunpack.c.l.b16 %v1279
    %v1463 = vunpack.c.h.b16 %v1279
    %v1464 = vunpack.c.l.b16 %v1280
    %v1465 = vunpack.c.h.b16 %v1280
    %v1466 = vunpack.c.l.b16 %v1281
    %v1467 = vunpack.c.h.b16 %v1281
    %v1468 = vunpack.c.l.b16 %v1282
    %v1469 = vunpack.c.h.b16 %v1282
    %v1470 = vunpack.c.l.b16 %v1283
    %v1471 = vunpack.c.h.b16 %v1283
    %v1472 = vunpack.c.l.b16 %v1284
    %v1473 = vunpack.c.h.b16 %v1284
    %v1474 = vunpack.c.l.b16 %v1285
    %v1475 = vunpack.c.h.b16 %v1285
    %v1476 = vunpack.c.l.b16 %v1286
    %v1477 = vunpack.c.h.b16 %v1286
    %v1478 = vunpack.c.l.b16 %v1287
    %v1479 = vunpack.c.h.b16 %v1287
    %v1480 = vunpack.c.l.b16 %v1288
    %v1481 = vunpack.c.h.b16 %v1288
    %v1482 = vunpack.c.l.b16 %v1289
    %v1483 = vunpack.c.h.b16 %v1289
    %v1484 = vunpack.c.l.b16 %v1290
    %v1485 = vunpack.c.h.b16 %v1290
    %v1486 = vunpack.c.l.b16 %v1291
    %v1487 = vunpack.c.h.b16 %v1291
    %v1488 = vunpack.c.l.b16 %v1292
    %v1489 = vunpack.c.h.b16 %v1292
    %v1490 = vunpack.c.l.b16 %v1293
    %v1491 = vunpack.c.h.b16 %v1293
    %v1492 = vunpack.c.l.b16 %v1294
    %v1493 = vunpack.c.h.b16 %v1294
    %v1494 = vunpack.c.l.b16 %v1295
    %v1495 = vunpack.c.h.b16 %v1295
    %v1496 = vunpack.c.l.b16 %v1296
    %v1497 = vunpack.c.h.b16 %v1296
    %v1498 = vunpack.c.l.b16 %v1297
    %v1499 = vunpack.c.h.b16 %v1297
    %v1500 = vunpack.c.l.b16 %v1298
    %v1501 = vunpack.c.h.b16 %v1298
    %v1502 = vunpack.c.l.b16 %v1299
    %v1503 = vunpack.c.h.b16 %v1299
    %v1504 = vunpack.c.l.b16 %v1300
    %v1505 = vunpack.c.h.b16 %v1300
    %v1506 = vunpack.c.l.b16 %v1301
    %v1507 = vunpack.c.h.b16 %v1301
    %v1508 = vunpack.c.l.b16 %v1302
    %v1509 = vunpack.c.h.b16 %v1302
    %v1510 = vunpack.c.l.b16 %v1303
    %v1511 = vunpack.c.h.b16 %v1303
    %v1512 = vunpack.c.l.b16 %v1304
    %v1513 = vunpack.c.h.b16 %v1304
    %v1514 = vpack.c.b16 %v1388, %v1386
    %v1515 = vpack.c.b16 %v1389, %v1387
    %v1516 = vpack.c.b16 %v1392, %v1390
    %v1517 = vpack.c.b16 %v1393, %v1391
    %v1518 = vpack.c.b16 %v1396, %v1394
    %v1519 = vpack.c.b16 %v1397, %v1395
    %v1520 = vpack.c.b16 %v1400, %v1398
    %v1521 = vpack.c.b16 %v1401, %v1399
    %v1522 = vpack.c.b16 %v1404, %v1402
    %v1523 = vpack.c.b16 %v1405, %v1403
    %v1524 = vpack.c.b16 %v1408, %v1406
    %v1525 = vpack.c.b16 %v1409, %v1407
    %v1526 = vpack.c.b16 %v1412, %v1410
    %v1527 = vpack.c.b16 %v1413, %v1411
    %v1528 = vpack.c.b16 %v1416, %v1414
    %v1529 = vpack.c.b16 %v1417, %v1415
    %v1530 = vpack.c.b16 %v1420, %v1418
    %v1531 = vpack.c.b16 %v1421, %v1419
    %v1532 = vpack.c.b16 %v1424, %v1422
    %v1533 = vpack.c.b16 %v1425, %v1423
    %v1534 = vpack.c.b16 %v1428, %v1426
    %v1535 = vpack.c.b16 %v1429, %v1427
    %v1536 = vpack.c.b16 %v1432, %v1430
    %v1537 = vpack.c.b16 %v1433, %v1431
    %v1538 = vpack.c.b16 %v1436, %v1434
    %v1539 = vpack.c.b16 %v1437, %v1435
    %v1540 = vpack.c.b16 %v1440, %v1438
    %v1541 = vpack.c.b16 %v1441, %v1439
    %v1542 = vpack.c.b16 %v1444, %v1442
    %v1543 = vpack.c.b16 %v1445, %v1443
    %v1544 = vpack.c.b16 %v1448, %v1446
    %v1545 = vpack.c.b16 %v1449, %v1447
    %v1546 = vpack.c.b16 %v1452, %v1450
    %v1547 = vpack.c.b16 %v1453, %v1451
    %v1548 = vpack.c.b16 %v1456, %v1454
    %v1549 = vpack.c.b16 %v1457, %v1455
    %v1550 = vpack.c.b16 %v1460, %v1458
    %v1551 = vpack.c.b16 %v1461, %v1459
    %v1552 = vpack.c.b16 %v1464, %v1462
    %v1553 = vpack.c.b16 %v1465, %v1463
    %v1554 = vpack.c.b16 %v1468, %v1466
    %v1555 = vpack.c.b16 %v1469, %v1467
    %v1556 = vpack.c.b16 %v1472, %v1470
    %v1557 = vpack.c.b16 %v1473, %v1471
    %v1558 = vpack.c.b16 %v1476, %v1474
    %v1559 = vpack.c.b16 %v1477, %v1475
    %v1560 = vpack.c.b16 %v1480, %v1478
    %v1561 = vpack.c.b16 %v1481, %v1479
    %v1562 = vpack.c.b16 %v1484, %v1482
    %v1563 = vpack.c.b16 %v1485, %v1483
    %v1564 = vpack.c.b16 %v1488, %v1486
    %v1565 = vpack.c.b16 %v1489, %v1487
    %v1566 = vpack.c.b16 %v1492, %v1490
    %v1567 = vpack.c.b16 %v1493, %v1491
    %v1568 = vpack.c.b16 %v1496, %v1494
    %v1569 = vpack.c.b16 %v1497, %v1495
    %v1570 = vpack.c.b16 %v1500, %v1498
    %v1571 = vpack.c.b16 %v1501, %v1499
    %v1572 = vpack.c.b16 %v1504, %v1502
    %v1573 = vpack.c.b16 %v1505, %v1503
    %v1574 = vpack.c.b16 %v1508, %v1506
    %v1575 = vpack.c.b16 %v1509, %v1507
    %v1576 = vpack.c.b16 %v1512, %v1510
    %v1577 = vpack.c.b16 %v1513, %v1511
    %1642 = vmatprep.subr.bf16.mxu0 %v1529
    %1643 = vmatpush1.bf16.msra.mxu0 %v1528
    %1644 = vmatprep.subr.bf16.mxu0 %v1527
    %1645 = vmatpush1.bf16.msra.mxu0 %v1526
    %1646 = vmatprep.subr.bf16.mxu0 %v1525
    %1647 = vmatpush1.bf16.msra.mxu0 %v1524
    %1648 = vmatprep.subr.bf16.mxu0 %v1523
    %1649 = vmatpush1.bf16.msra.mxu0 %v1522
    %1650 = vmatprep.subr.bf16.mxu0 %v1521
    %1651 = vmatpush1.bf16.msra.mxu0 %v1520
    %1652 = vmatprep.subr.bf16.mxu0 %v1519
    %1653 = vmatpush1.bf16.msra.mxu0 %v1518
    %1654 = vmatprep.subr.bf16.mxu0 %v1517
    %1655 = vmatpush1.bf16.msra.mxu0 %v1516
    %1656 = vmatprep.subr.bf16.mxu0 %v1515
    %1657 = vmatpush1.bf16.msra.mxu0 %v1514
    %1658 = vmatprep.subr.bf16.mxu0 %v1545
    %1659 = vmatpush2.bf16.msra.mxu0 %v1544
    %1660 = vmatprep.subr.bf16.mxu0 %v1543
    %1661 = vmatpush2.bf16.msra.mxu0 %v1542
    %1662 = vmatprep.subr.bf16.mxu0 %v1541
    %1663 = vmatpush2.bf16.msra.mxu0 %v1540
    %1664 = vmatprep.subr.bf16.mxu0 %v1539
    %1665 = vmatpush2.bf16.msra.mxu0 %v1538
    %1666 = vmatprep.subr.bf16.mxu0 %v1537
    %1667 = vmatpush2.bf16.msra.mxu0 %v1536
    %1668 = vmatprep.subr.bf16.mxu0 %v1535
    %1669 = vmatpush2.bf16.msra.mxu0 %v1534
    %1670 = vmatprep.subr.bf16.mxu0 %v1533
    %1671 = vmatpush2.bf16.msra.mxu0 %v1532
    %1672 = vmatprep.subr.bf16.mxu0 %v1531
    %1673 = vmatpush2.bf16.msra.mxu0 %v1530
    %1674 = vmatprep.mubr.bf16.mxu0 %v1238
    %1675 = vmatmul.mubr.bf16.gmra.mxu0 %v1237
    %v1676 = vpop.f32.mrf.mxu0
    %v1677 = vadd.f32 %v1315, %v1676
    %v1678 = vpop.f32.mrf.mxu0
    %v1679 = vadd.f32 %v1319, %v1678
    %v1680 = vpop.f32.mrf.mxu0
    %v1681 = vpop.f32.mrf.mxu0
    %1682 = vdwg.mxu0
    %1683 = vmatprep.subr.bf16.mxu0 %v1561
    %1684 = vmatpush1.bf16.msra.mxu0 %v1560
    %1685 = vmatprep.subr.bf16.mxu0 %v1559
    %1686 = vmatpush1.bf16.msra.mxu0 %v1558
    %1687 = vmatprep.subr.bf16.mxu0 %v1557
    %1688 = vmatpush1.bf16.msra.mxu0 %v1556
    %1689 = vmatprep.subr.bf16.mxu0 %v1555
    %1690 = vmatpush1.bf16.msra.mxu0 %v1554
    %1691 = vmatprep.subr.bf16.mxu0 %v1553
    %1692 = vmatpush1.bf16.msra.mxu0 %v1552
    %1693 = vmatprep.subr.bf16.mxu0 %v1551
    %1694 = vmatpush1.bf16.msra.mxu0 %v1550
    %1695 = vmatprep.subr.bf16.mxu0 %v1549
    %1696 = vmatpush1.bf16.msra.mxu0 %v1548
    %1697 = vmatprep.subr.bf16.mxu0 %v1547
    %1698 = vmatpush1.bf16.msra.mxu0 %v1546
    %1699 = vmatprep.subr.bf16.mxu0 %v1577
    %1700 = vmatpush2.bf16.msra.mxu0 %v1576
    %1701 = vmatprep.subr.bf16.mxu0 %v1575
    %1702 = vmatpush2.bf16.msra.mxu0 %v1574
    %1703 = vmatprep.subr.bf16.mxu0 %v1573
    %1704 = vmatpush2.bf16.msra.mxu0 %v1572
    %1705 = vmatprep.subr.bf16.mxu0 %v1571
    %1706 = vmatpush2.bf16.msra.mxu0 %v1570
    %1707 = vmatprep.subr.bf16.mxu0 %v1569
    %1708 = vmatpush2.bf16.msra.mxu0 %v1568
    %1709 = vmatprep.subr.bf16.mxu0 %v1567
    %1710 = vmatpush2.bf16.msra.mxu0 %v1566
    %1711 = vmatprep.subr.bf16.mxu0 %v1565
    %1712 = vmatpush2.bf16.msra.mxu0 %v1564
    %1713 = vmatprep.subr.bf16.mxu0 %v1563
    %1714 = vmatpush2.bf16.msra.mxu0 %v1562
    %1715 = vmatprep.mubr.bf16.mxu0 %v1240
    %1716 = vmatmul.mubr.bf16.gmra.mxu0 %v1239
    %v1717 = vpop.f32.mrf.mxu0
    %v1718 = vadd.f32 %v1677, %v1717
    %v1719 = vpop.f32.mrf.mxu0
    %v1720 = vadd.f32 %v1679, %v1719
    %v1721 = vpop.f32.mrf.mxu0
    %v1722 = vpop.f32.mrf.mxu0
    %1723 = vdwg.mxu0
    %v1726 = vcombine.low %v1718, %v1720
    %v1728 = vunpack.c.l.s4 1983009808
    %v1729 = vunpack.c.0.s8 %v1728
    %v1730 = vlaneseq
    %v1731 = vshrl.u32 %v1730, 7
    %v1732 = vsub.s32 %v1729, %v1731
    %v1733 = vrot.slane %v1726, %v1732
    %1735 = vst [vmem:[#allocation10] sm:$0xf] %v1733
    // Predicated region
    $region38: #{tpu_custom_call.1} parent=1 // pred_check
      _
    $region39: #{tpu_custom_call.1} parent=1 // pred_check_branch
      %1737 = sbr.rel (0) target = $region41
    $region40: #{tpu_custom_call.1} parent=1 // pred_region
      %s1739 = ssub.s32 64, 64
      %1740 = vsyncadd [#allocation4], %s1739
      %s1742 = sshll.u32 [#allocation10], 4
      %s1743 = int_to_ptr.vmem [resolvable:$true] %s1742
      %1745 = dma.vmem_to_hbm [thread:$0]  %s1743, 64, %s5, [#allocation4]
    $region41: #{tpu_custom_call.1} parent=1 // pred_fallthru
      _
    // Predicated region
    $region42: #{tpu_custom_call.1} parent=1 // pred_check
      _
    $region43: #{tpu_custom_call.1} parent=1 // pred_check_branch
      %1747 = sbr.rel (0) target = $region45
    $region44: #{tpu_custom_call.1} parent=1 // pred_region
      %1748 = dma.done [#allocation4], 64
    $region45: #{tpu_custom_call.1} parent=1 // pred_fallthru
      _
    %1749 = vsyncpa [#allocation3], 1
    %1750 = vsyncpa [#allocation6], 1
    %1751 = vsyncpa [#allocation9], 1
    %1752 = vsyncpa [#allocation4], 1

</llo_original>
